<compile_context>
chip_gen: v5e
topology: v5e:2x2
jax: 0.10.0
libtpu: 0.0.40
codegen_flags: <defaults>
</compile_context>

<pallas_src>
import functools

import jax
import jax.numpy as jnp
from jax import lax
from jax.experimental import pallas as pl
from jax.experimental.pallas import tpu as pltpu

NEG_SLOPE = 0.01   # torch.nn.LeakyReLU default
BN_EPS = 1e-5      # torch.nn.BatchNorm1d default


def _leaky_relu(x):
    return jnp.where(x >= 0, x, NEG_SLOPE * x)


def _batchnorm(h, gamma, beta):
    # BatchNorm1d training-mode forward; one-pass stats: var = E[h^2] - mean^2 (biased).
    mean = jnp.mean(h, axis=0, keepdims=True)
    mean_sq = jnp.mean(h * h, axis=0, keepdims=True)
    var = jnp.maximum(mean_sq - mean * mean, 0.0)
    inv = lax.rsqrt(var + BN_EPS)
    return (h - mean) * inv * gamma + beta


def gnn_fused_kernel(x_ref, u_ref, idx_ref, ea_ref,
                     w_in_ref, w_hid_ref, w_out_ref, vec_h_ref, vec_f_ref,
                     out_ref, *,
                     num_mp, fn, fe, fg_pad, hidden, n_nodes, n_graphs, matmul_dtype):
    """All num_mp message-passing steps fused in one kernel, everything VMEM-resident.

    Packed params (static, sublane-aligned slices):
      w_in  = [nW1(fn,H) | aW1n(fn,H) | aW1e(fe,H) | aW1g(fg_pad,H)]   stacked on rows
      w_hid = [nW2(H,H)  | aW2(H,H)]                                    stacked on rows
      w_out = [nW3(H,fn) | aW3(H,fe)]                                   stacked on cols
      vec_h = 12 x [H] (node b1,g1,be1,b2,g2,be2, all ab1,ag1,abe1,ab2,ag2,abe2)
      vec_f = 2  x [fn] (node b3, all ab3)
    """
    e_rows = ea_ref.shape[0]

    # ---- unpack parameters ----
    w_in = w_in_ref[...]
    nW1 = w_in[0:fn]
    aW1n = w_in[fn:2 * fn]
    aW1e = w_in[2 * fn:2 * fn + fe]
    aW1g = w_in[2 * fn + fe:2 * fn + fe + fg_pad]

    w_hid = w_hid_ref[...]
    nW2 = w_hid[0:hidden]
    aW2 = w_hid[hidden:2 * hidden]

    w_out = w_out_ref[...]
    nW3 = w_out[:, 0:fn]
    aW3 = w_out[:, fn:fn + fe]

    vh = vec_h_ref[...]
    nb1, ng1, nbe1 = vh[0:1], vh[1:2], vh[2:3]
    nb2, ng2, nbe2 = vh[3:4], vh[4:5], vh[5:6]
    ab1, ag1, abe1 = vh[6:7], vh[7:8], vh[8:9]
    ab2, ag2, abe2 = vh[9:10], vh[10:11], vh[11:12]

    vf = vec_f_ref[...]
    nb3 = vf[0:1]
    ab3 = vf[1:2]

    md = matmul_dtype

    def dot_w(a, w):      # narrow-operand MXU matmul, f32 accumulate
        return jnp.dot(a.astype(md), w, preferred_element_type=jnp.float32)

    # Cast weights to the MXU operand dtype once (not per mp iteration).
    nW1c, nW2c, nW3c = nW1.astype(md), nW2.astype(md), nW3.astype(md)
    aW1nc, aW1ec, aW1gc = aW1n.astype(md), aW1e.astype(md), aW1g.astype(md)
    aW2c, aW3c = aW2.astype(md), aW3.astype(md)

    # ---- in-kernel gather via one-hot MXU matmul (exact, f32) ----
    idx = idx_ref[...]                                              # [E, 3] int32
    iota_n = lax.broadcasted_iota(jnp.int32, (e_rows, n_nodes), 1)
    iota_g = lax.broadcasted_iota(jnp.int32, (e_rows, n_graphs), 1)
    oh_row = jnp.where(iota_n == idx[:, 0:1], 1.0, 0.0)
    oh_col = jnp.where(iota_n == idx[:, 1:2], 1.0, 0.0)
    oh_g = jnp.where(iota_g == idx[:, 2:3], 1.0, 0.0)
    x = x_ref[...]
    u = u_ref[...]
    src = jnp.dot(oh_row, x, preferred_element_type=jnp.float32)    # x[row]        [E, fn]
    dst = jnp.dot(oh_col, x, preferred_element_type=jnp.float32)    # x[col]        [E, fn]
    ue = jnp.dot(oh_g, u, preferred_element_type=jnp.float32)       # u[batch[row]] [E, fg_pad]

    def node_mlp(z):
        h = dot_w(z, nW1c) + nb1
        h = _batchnorm(_leaky_relu(h), ng1, nbe1)
        h = dot_w(h, nW2c) + nb2
        h = _batchnorm(_leaky_relu(h), ng2, nbe2)
        return dot_w(h, nW3c) + nb3

    # ---- loop-invariant hoist: x, u, edge_index, batch never change across mp steps,
    #      so the node MLP (incl. its BN stats over the E gathered rows) and the
    #      aW1n / aW1g / +ab1 terms of mlp_all's first linear are computed once. ----
    h_src = node_mlp(src)                                           # [E, fn]
    h_dst = node_mlp(dst)                                           # [E, fn]
    comb = h_src + h_dst
    base = dot_w(comb, aW1nc) + dot_w(ue, aW1gc) + ab1              # [E, H]

    # Pre-broadcast loop-carried bias/gamma/beta once (JAX does not CSE broadcasts).
    ag1E = jnp.broadcast_to(ag1, (e_rows, hidden))
    abe1E = jnp.broadcast_to(abe1, (e_rows, hidden))
    ab2E = jnp.broadcast_to(ab2, (e_rows, hidden))
    ag2E = jnp.broadcast_to(ag2, (e_rows, hidden))
    abe2E = jnp.broadcast_to(abe2, (e_rows, hidden))
    ab3E = jnp.broadcast_to(ab3, (e_rows, fe))

    # ---- per-iteration work: only the edge_attr-dependent path ----
    ea = ea_ref[...]
    for _ in range(num_mp):                     # static unroll (num_mp is small)
        h = base + dot_w(ea, aW1ec)
        h = _batchnorm(_leaky_relu(h), ag1E, abe1E)
        h = dot_w(h, aW2c) + ab2E
        h = _batchnorm(_leaky_relu(h), ag2E, abe2E)
        ea = dot_w(h, aW3c) + ab3E
    out_ref[...] = ea


def pack_gnn_params(node_params, all_params):
    """Pack 22 tiny parameter arrays into 5 DMA-friendly arrays.

    Call ONCE outside the per-forward path and reuse the packed arrays every call.
    The global-feature block of w_in is zero-padded to a multiple of 8 rows so all
    static slices inside the kernel are sublane-aligned.
    """
    nW1, nb1, ng1, nbe1, nW2, nb2, ng2, nbe2, nW3, nb3 = node_params
    aW1n, aW1e, aW1g, ab1, ag1, abe1, aW2, ab2, ag2, abe2, aW3, ab3 = all_params
    fg = aW1g.shape[0]
    fg_pad = ((fg + 7) // 8) * 8
    aW1g_pad = jnp.pad(aW1g, ((0, fg_pad - fg), (0, 0)))
    w_in = jnp.concatenate([nW1, aW1n, aW1e, aW1g_pad], axis=0)     # [2fn+fe+fg_pad, H]
    w_hid = jnp.concatenate([nW2, aW2], axis=0)                     # [2H, H]
    w_out = jnp.concatenate([nW3, aW3], axis=1)                     # [H, fn+fe]
    vec_h = jnp.concatenate([nb1, ng1, nbe1, nb2, ng2, nbe2,
                             ab1, ag1, abe1, ab2, ag2, abe2], axis=0)   # [12, H]
    vec_f = jnp.concatenate([nb3, ab3], axis=0)                     # [2, fn]
    return (w_in, w_hid, w_out, vec_h, vec_f)


def gnn_forward(x, edge_index, edge_attr, u, batch, packed, num_mp,
                matmul_dtype=jnp.bfloat16):
    """Returns (x, new_edge_attr, u) — only edge_attr changes, as in the torch module."""
    w_in, w_hid, w_out, vec_h, vec_f = packed
    fn = x.shape[1]
    fe = edge_attr.shape[1]
    hidden = w_hid.shape[1]
    fg_pad = w_in.shape[0] - 2 * fn - fe        # static (derived from packed shape)
    fg = u.shape[1]
    n_nodes = x.shape[0]
    n_graphs = u.shape[0]

    # Only tiny int32 index data leaves the wrapper; float gathers happen in-kernel.
    row, col = edge_index[0], edge_index[1]
    gb = batch[row]                                              # graph id per edge
    idx = jnp.stack([row, col, gb], axis=1).astype(jnp.int32)    # [E, 3]
    u_pad = jnp.pad(u, ((0, 0), (0, fg_pad - fg)))               # zero-pad globals

    kernel = functools.partial(
        gnn_fused_kernel, num_mp=num_mp, fn=fn, fe=fe, fg_pad=fg_pad, hidden=hidden,
        n_nodes=n_nodes, n_graphs=n_graphs, matmul_dtype=matmul_dtype)
    vmem = pl.BlockSpec(memory_space=pltpu.MemorySpace.VMEM)
    args = (x, u_pad, idx, edge_attr, w_in, w_hid, w_out, vec_h, vec_f)
    ea_out = pl.pallas_call(
        kernel,
        out_shape=jax.ShapeDtypeStruct(edge_attr.shape, edge_attr.dtype),
        in_specs=[vmem] * len(args),
        out_specs=vmem,
        input_output_aliases={3: 0},             # reuse edge_attr's HBM buffer for the output
    )(*args)
    return x, ea_out, u


# ------------------------- deterministic parameter init -------------------------

def _linear_init(key, d_in, d_out):
    # torch.nn.Linear default init: U(-1/sqrt(fan_in), 1/sqrt(fan_in))
    kw, kb = jax.random.split(key)
    bound = 1.0 / jnp.sqrt(jnp.float32(d_in))
    W = jax.random.uniform(kw, (d_in, d_out), jnp.float32, -bound, bound)
    b = jax.random.uniform(kb, (1, d_out), jnp.float32, -bound, bound)
    return W, b


def init_mlp_params(key, d_in, d_out, hidden):
    k1, k2, k3 = jax.random.split(key, 3)
    W1, b1 = _linear_init(k1, d_in, hidden)
    W2, b2 = _linear_init(k2, hidden, hidden)
    W3, b3 = _linear_init(k3, hidden, d_out)
    g1 = jnp.ones((1, hidden), jnp.float32)    # BN gamma (layer 1)
    be1 = jnp.zeros((1, hidden), jnp.float32)  # BN beta  (layer 1)
    g2 = jnp.ones((1, hidden), jnp.float32)    # BN gamma (layer 2)
    be2 = jnp.zeros((1, hidden), jnp.float32)  # BN beta  (layer 2)
    return [W1, b1, g1, be1, W2, b2, g2, be2, W3, b3]


if __name__ == "__main__":
    # Small shapes implied by the forward:
    NUM_NODE_FEATS = 8
    NUM_EDGE_FEATS = 8          # == NUM_NODE_FEATS (required by mlp_all input dims)
    NUM_GLOBAL_FEATS = 4
    HIDDEN = 32                 # size_mlp_layers
    NUM_MP = 3                  # num_mp
    N_NODES = 10
    N_EDGES = 24
    N_GRAPHS = 2

    key = jax.random.PRNGKey(0)
    k_x, k_ei, k_ea, k_u, k_node, k_all = jax.random.split(key, 6)

    x = jax.random.normal(k_x, (N_NODES, NUM_NODE_FEATS), jnp.float32)
    edge_index = jax.random.randint(k_ei, (2, N_EDGES), 0, N_NODES, jnp.int32)
    edge_attr = jax.random.normal(k_ea, (N_EDGES, NUM_EDGE_FEATS), jnp.float32)
    u = jax.random.normal(k_u, (N_GRAPHS, NUM_GLOBAL_FEATS), jnp.float32)
    batch = jnp.concatenate([
        jnp.zeros((N_NODES // 2,), jnp.int32),
        jnp.ones((N_NODES - N_NODES // 2,), jnp.int32),
    ])

    node_params = init_mlp_params(k_node, NUM_NODE_FEATS, NUM_NODE_FEATS, HIDDEN)

    all_in = NUM_NODE_FEATS + NUM_EDGE_FEATS + NUM_GLOBAL_FEATS
    all_raw = init_mlp_params(k_all, all_in, NUM_EDGE_FEATS, HIDDEN)
    aW1, ab1, ag1, abe1, aW2, ab2, ag2, abe2, aW3, ab3 = all_raw
    # Split the first-layer weight to match the [comb | ea | u_e] concatenation.
    aW1n = aW1[:NUM_NODE_FEATS]
    aW1e = aW1[NUM_NODE_FEATS:NUM_NODE_FEATS + NUM_EDGE_FEATS]
    aW1g = aW1[NUM_NODE_FEATS + NUM_EDGE_FEATS:]
    all_params = [aW1n, aW1e, aW1g, ab1, ag1, abe1, aW2, ab2, ag2, abe2, aW3, ab3]

    # Pack parameters ONCE (outside the per-forward path).
    packed = pack_gnn_params(node_params, all_params)

    fwd = jax.jit(functools.partial(gnn_forward, num_mp=NUM_MP))
    x_out, ea_out, u_out = fwd(x, edge_index, edge_attr, u, batch, packed)
    jax.block_until_ready(ea_out)

    assert x_out.shape == x.shape
    assert ea_out.shape == (N_EDGES, NUM_EDGE_FEATS)
    assert u_out.shape == u.shape
    assert bool(jnp.all(jnp.isfinite(ea_out)))
    print("KERNEL_OK")
</pallas_src>

<mosaic_0001>
module attributes {stable_mosaic.version = 11 : i64} {
  func.func @gnn_fused_kernel(%arg0: memref<10x8xf32, #tpu.memory_space<vmem>>, %arg1: memref<2x8xf32, #tpu.memory_space<vmem>>, %arg2: memref<24x3xi32, #tpu.memory_space<vmem>>, %arg3: memref<24x8xf32, #tpu.memory_space<vmem>>, %arg4: memref<32x32xf32, #tpu.memory_space<vmem>>, %arg5: memref<64x32xf32, #tpu.memory_space<vmem>>, %arg6: memref<32x16xf32, #tpu.memory_space<vmem>>, %arg7: memref<12x32xf32, #tpu.memory_space<vmem>>, %arg8: memref<2x8xf32, #tpu.memory_space<vmem>>, %arg9: memref<24x8xf32, #tpu.memory_space<vmem>>) attributes {dimension_semantics = [], scalar_prefetch = 0 : i64, scratch_operands = 0 : i64, tpu.core_type = #tpu.core_type<tc>} {
    %c0 = arith.constant 0 : index
    %c0_0 = arith.constant 0 : index
    %0 = vector.load %arg4[%c0, %c0_0] : memref<32x32xf32, #tpu.memory_space<vmem>>, vector<32x32xf32>
    %1 = vector.extract_strided_slice %0 {offsets = [0, 0], sizes = [8, 32], strides = [1, 1]} : vector<32x32xf32> to vector<8x32xf32>
    %2 = vector.extract_strided_slice %0 {offsets = [8, 0], sizes = [8, 32], strides = [1, 1]} : vector<32x32xf32> to vector<8x32xf32>
    %3 = vector.extract_strided_slice %0 {offsets = [16, 0], sizes = [8, 32], strides = [1, 1]} : vector<32x32xf32> to vector<8x32xf32>
    %4 = vector.extract_strided_slice %0 {offsets = [24, 0], sizes = [8, 32], strides = [1, 1]} : vector<32x32xf32> to vector<8x32xf32>
    %c0_1 = arith.constant 0 : index
    %c0_2 = arith.constant 0 : index
    %5 = vector.load %arg5[%c0_1, %c0_2] : memref<64x32xf32, #tpu.memory_space<vmem>>, vector<64x32xf32>
    %6 = vector.extract_strided_slice %5 {offsets = [0, 0], sizes = [32, 32], strides = [1, 1]} : vector<64x32xf32> to vector<32x32xf32>
    %7 = vector.extract_strided_slice %5 {offsets = [32, 0], sizes = [32, 32], strides = [1, 1]} : vector<64x32xf32> to vector<32x32xf32>
    %c0_3 = arith.constant 0 : index
    %c0_4 = arith.constant 0 : index
    %8 = vector.load %arg6[%c0_3, %c0_4] : memref<32x16xf32, #tpu.memory_space<vmem>>, vector<32x16xf32>
    %9 = vector.extract_strided_slice %8 {offsets = [0, 0], sizes = [32, 8], strides = [1, 1]} : vector<32x16xf32> to vector<32x8xf32>
    %10 = vector.extract_strided_slice %8 {offsets = [0, 8], sizes = [32, 8], strides = [1, 1]} : vector<32x16xf32> to vector<32x8xf32>
    %c0_5 = arith.constant 0 : index
    %c0_6 = arith.constant 0 : index
    %11 = vector.load %arg7[%c0_5, %c0_6] : memref<12x32xf32, #tpu.memory_space<vmem>>, vector<12x32xf32>
    %12 = vector.extract_strided_slice %11 {offsets = [0, 0], sizes = [1, 32], strides = [1, 1]} : vector<12x32xf32> to vector<1x32xf32>
    %13 = vector.extract_strided_slice %11 {offsets = [1, 0], sizes = [1, 32], strides = [1, 1]} : vector<12x32xf32> to vector<1x32xf32>
    %14 = vector.extract_strided_slice %11 {offsets = [2, 0], sizes = [1, 32], strides = [1, 1]} : vector<12x32xf32> to vector<1x32xf32>
    %15 = vector.extract_strided_slice %11 {offsets = [3, 0], sizes = [1, 32], strides = [1, 1]} : vector<12x32xf32> to vector<1x32xf32>
    %16 = vector.extract_strided_slice %11 {offsets = [4, 0], sizes = [1, 32], strides = [1, 1]} : vector<12x32xf32> to vector<1x32xf32>
    %17 = vector.extract_strided_slice %11 {offsets = [5, 0], sizes = [1, 32], strides = [1, 1]} : vector<12x32xf32> to vector<1x32xf32>
    %18 = vector.extract_strided_slice %11 {offsets = [6, 0], sizes = [1, 32], strides = [1, 1]} : vector<12x32xf32> to vector<1x32xf32>
    %19 = vector.extract_strided_slice %11 {offsets = [7, 0], sizes = [1, 32], strides = [1, 1]} : vector<12x32xf32> to vector<1x32xf32>
    %20 = vector.extract_strided_slice %11 {offsets = [8, 0], sizes = [1, 32], strides = [1, 1]} : vector<12x32xf32> to vector<1x32xf32>
    %21 = vector.extract_strided_slice %11 {offsets = [9, 0], sizes = [1, 32], strides = [1, 1]} : vector<12x32xf32> to vector<1x32xf32>
    %22 = vector.extract_strided_slice %11 {offsets = [10, 0], sizes = [1, 32], strides = [1, 1]} : vector<12x32xf32> to vector<1x32xf32>
    %23 = vector.extract_strided_slice %11 {offsets = [11, 0], sizes = [1, 32], strides = [1, 1]} : vector<12x32xf32> to vector<1x32xf32>
    %c0_7 = arith.constant 0 : index
    %c0_8 = arith.constant 0 : index
    %24 = vector.load %arg8[%c0_7, %c0_8] : memref<2x8xf32, #tpu.memory_space<vmem>>, vector<2x8xf32>
    %25 = vector.extract_strided_slice %24 {offsets = [0, 0], sizes = [1, 8], strides = [1, 1]} : vector<2x8xf32> to vector<1x8xf32>
    %26 = vector.extract_strided_slice %24 {offsets = [1, 0], sizes = [1, 8], strides = [1, 1]} : vector<2x8xf32> to vector<1x8xf32>
    %27 = arith.truncf %1 : vector<8x32xf32> to vector<8x32xbf16>
    %28 = arith.truncf %6 : vector<32x32xf32> to vector<32x32xbf16>
    %29 = arith.truncf %9 : vector<32x8xf32> to vector<32x8xbf16>
    %30 = arith.truncf %2 : vector<8x32xf32> to vector<8x32xbf16>
    %31 = arith.truncf %3 : vector<8x32xf32> to vector<8x32xbf16>
    %32 = arith.truncf %4 : vector<8x32xf32> to vector<8x32xbf16>
    %33 = arith.truncf %7 : vector<32x32xf32> to vector<32x32xbf16>
    %34 = arith.truncf %10 : vector<32x8xf32> to vector<32x8xbf16>
    %c0_9 = arith.constant 0 : index
    %c0_10 = arith.constant 0 : index
    %35 = vector.load %arg2[%c0_9, %c0_10] : memref<24x3xi32, #tpu.memory_space<vmem>>, vector<24x3xi32>
    %36 = tpu.iota {dimensions = array<i32: 1>} : vector<24x10xi32>
    %37 = tpu.iota {dimensions = array<i32: 1>} : vector<24x2xi32>
    %38 = vector.extract_strided_slice %35 {offsets = [0, 0], sizes = [24, 1], strides = [1, 1]} : vector<24x3xi32> to vector<24x1xi32>
    %39 = vector.broadcast %38 : vector<24x1xi32> to vector<24x10xi32>
    %40 = arith.cmpi eq, %36, %39 : vector<24x10xi32>
    %cst = arith.constant 1.000000e+00 : f32
    %cst_11 = arith.constant 0.000000e+00 : f32
    %41 = vector.broadcast %cst : f32 to vector<24x10xf32>
    %42 = vector.broadcast %cst_11 : f32 to vector<24x10xf32>
    %43 = arith.select %40, %41, %42 : vector<24x10xi1>, vector<24x10xf32>
    %44 = vector.extract_strided_slice %35 {offsets = [0, 1], sizes = [24, 1], strides = [1, 1]} : vector<24x3xi32> to vector<24x1xi32>
    %45 = vector.broadcast %44 : vector<24x1xi32> to vector<24x10xi32>
    %46 = arith.cmpi eq, %36, %45 : vector<24x10xi32>
    %cst_12 = arith.constant 1.000000e+00 : f32
    %cst_13 = arith.constant 0.000000e+00 : f32
    %47 = vector.broadcast %cst_12 : f32 to vector<24x10xf32>
    %48 = vector.broadcast %cst_13 : f32 to vector<24x10xf32>
    %49 = arith.select %46, %47, %48 : vector<24x10xi1>, vector<24x10xf32>
    %50 = vector.extract_strided_slice %35 {offsets = [0, 2], sizes = [24, 1], strides = [1, 1]} : vector<24x3xi32> to vector<24x1xi32>
    %51 = vector.broadcast %50 : vector<24x1xi32> to vector<24x2xi32>
    %52 = arith.cmpi eq, %37, %51 : vector<24x2xi32>
    %cst_14 = arith.constant 1.000000e+00 : f32
    %cst_15 = arith.constant 0.000000e+00 : f32
    %53 = vector.broadcast %cst_14 : f32 to vector<24x2xf32>
    %54 = vector.broadcast %cst_15 : f32 to vector<24x2xf32>
    %55 = arith.select %52, %53, %54 : vector<24x2xi1>, vector<24x2xf32>
    %c0_16 = arith.constant 0 : index
    %c0_17 = arith.constant 0 : index
    %56 = vector.load %arg0[%c0_16, %c0_17] : memref<10x8xf32, #tpu.memory_space<vmem>>, vector<10x8xf32>
    %c0_18 = arith.constant 0 : index
    %c0_19 = arith.constant 0 : index
    %57 = vector.load %arg1[%c0_18, %c0_19] : memref<2x8xf32, #tpu.memory_space<vmem>>, vector<2x8xf32>
    %cst_20 = arith.constant dense<0.000000e+00> : vector<24x8xf32>
    %58 = tpu.matmul %43, %56, %cst_20 {dimension_numbers = #tpu.dot_dimension_numbers<[1], [0], [0], [1], [0, 0, 1, 1], [], []>} : vector<24x10xf32>, vector<10x8xf32>, vector<24x8xf32> -> vector<24x8xf32>
    %cst_21 = arith.constant dense<0.000000e+00> : vector<24x8xf32>
    %59 = tpu.matmul %49, %56, %cst_21 {dimension_numbers = #tpu.dot_dimension_numbers<[1], [0], [0], [1], [0, 0, 1, 1], [], []>} : vector<24x10xf32>, vector<10x8xf32>, vector<24x8xf32> -> vector<24x8xf32>
    %cst_22 = arith.constant dense<0.000000e+00> : vector<24x8xf32>
    %60 = tpu.matmul %55, %57, %cst_22 {dimension_numbers = #tpu.dot_dimension_numbers<[1], [0], [0], [1], [0, 0, 1, 1], [], []>} : vector<24x2xf32>, vector<2x8xf32>, vector<24x8xf32> -> vector<24x8xf32>
    %61 = arith.truncf %58 : vector<24x8xf32> to vector<24x8xbf16>
    %cst_23 = arith.constant dense<0.000000e+00> : vector<24x32xf32>
    %62 = tpu.matmul %61, %27, %cst_23 {dimension_numbers = #tpu.dot_dimension_numbers<[1], [0], [0], [1], [0, 0, 1, 1], [], []>} : vector<24x8xbf16>, vector<8x32xbf16>, vector<24x32xf32> -> vector<24x32xf32>
    %63 = vector.broadcast %12 : vector<1x32xf32> to vector<24x32xf32>
    %64 = arith.addf %62, %63 : vector<24x32xf32>
    %cst_24 = arith.constant 0.000000e+00 : f32
    %65 = vector.broadcast %cst_24 : f32 to vector<24x32xf32>
    %66 = arith.cmpf oge, %64, %65 : vector<24x32xf32>
    %cst_25 = arith.constant 0.00999999977 : f32
    %67 = vector.broadcast %cst_25 : f32 to vector<24x32xf32>
    %68 = arith.mulf %67, %64 : vector<24x32xf32>
    %69 = arith.select %66, %64, %68 : vector<24x32xi1>, vector<24x32xf32>
    %cst_26 = arith.constant dense<0.000000e+00> : vector<32xf32>
    %70 = vector.multi_reduction <add>, %69, %cst_26 [0] : vector<24x32xf32> to vector<32xf32>
    %71 = vector.shape_cast %70 : vector<32xf32> to vector<1x32xf32>
    %cst_27 = arith.constant 2.400000e+01 : f32
    %72 = vector.broadcast %cst_27 : f32 to vector<1x32xf32>
    %73 = arith.divf %71, %72 : vector<1x32xf32>
    %74 = arith.mulf %69, %69 : vector<24x32xf32>
    %cst_28 = arith.constant dense<0.000000e+00> : vector<32xf32>
    %75 = vector.multi_reduction <add>, %74, %cst_28 [0] : vector<24x32xf32> to vector<32xf32>
    %76 = vector.shape_cast %75 : vector<32xf32> to vector<1x32xf32>
    %cst_29 = arith.constant 2.400000e+01 : f32
    %77 = vector.broadcast %cst_29 : f32 to vector<1x32xf32>
    %78 = arith.divf %76, %77 : vector<1x32xf32>
    %79 = arith.mulf %73, %73 : vector<1x32xf32>
    %80 = arith.subf %78, %79 : vector<1x32xf32>
    %cst_30 = arith.constant 0.000000e+00 : f32
    %81 = vector.broadcast %cst_30 : f32 to vector<1x32xf32>
    %82 = arith.maximumf %80, %81 : vector<1x32xf32>
    %cst_31 = arith.constant 9.99999974E-6 : f32
    %83 = vector.broadcast %cst_31 : f32 to vector<1x32xf32>
    %84 = arith.addf %82, %83 : vector<1x32xf32>
    %85 = math.rsqrt %84 : vector<1x32xf32>
    %86 = vector.broadcast %73 : vector<1x32xf32> to vector<24x32xf32>
    %87 = arith.subf %69, %86 : vector<24x32xf32>
    %88 = vector.broadcast %85 : vector<1x32xf32> to vector<24x32xf32>
    %89 = arith.mulf %87, %88 : vector<24x32xf32>
    %90 = vector.broadcast %13 : vector<1x32xf32> to vector<24x32xf32>
    %91 = arith.mulf %89, %90 : vector<24x32xf32>
    %92 = vector.broadcast %14 : vector<1x32xf32> to vector<24x32xf32>
    %93 = arith.addf %91, %92 : vector<24x32xf32>
    %94 = arith.truncf %93 : vector<24x32xf32> to vector<24x32xbf16>
    %cst_32 = arith.constant dense<0.000000e+00> : vector<24x32xf32>
    %95 = tpu.matmul %94, %28, %cst_32 {dimension_numbers = #tpu.dot_dimension_numbers<[1], [0], [0], [1], [0, 0, 1, 1], [], []>} : vector<24x32xbf16>, vector<32x32xbf16>, vector<24x32xf32> -> vector<24x32xf32>
    %96 = vector.broadcast %15 : vector<1x32xf32> to vector<24x32xf32>
    %97 = arith.addf %95, %96 : vector<24x32xf32>
    %cst_33 = arith.constant 0.000000e+00 : f32
    %98 = vector.broadcast %cst_33 : f32 to vector<24x32xf32>
    %99 = arith.cmpf oge, %97, %98 : vector<24x32xf32>
    %cst_34 = arith.constant 0.00999999977 : f32
    %100 = vector.broadcast %cst_34 : f32 to vector<24x32xf32>
    %101 = arith.mulf %100, %97 : vector<24x32xf32>
    %102 = arith.select %99, %97, %101 : vector<24x32xi1>, vector<24x32xf32>
    %cst_35 = arith.constant dense<0.000000e+00> : vector<32xf32>
    %103 = vector.multi_reduction <add>, %102, %cst_35 [0] : vector<24x32xf32> to vector<32xf32>
    %104 = vector.shape_cast %103 : vector<32xf32> to vector<1x32xf32>
    %cst_36 = arith.constant 2.400000e+01 : f32
    %105 = vector.broadcast %cst_36 : f32 to vector<1x32xf32>
    %106 = arith.divf %104, %105 : vector<1x32xf32>
    %107 = arith.mulf %102, %102 : vector<24x32xf32>
    %cst_37 = arith.constant dense<0.000000e+00> : vector<32xf32>
    %108 = vector.multi_reduction <add>, %107, %cst_37 [0] : vector<24x32xf32> to vector<32xf32>
    %109 = vector.shape_cast %108 : vector<32xf32> to vector<1x32xf32>
    %cst_38 = arith.constant 2.400000e+01 : f32
    %110 = vector.broadcast %cst_38 : f32 to vector<1x32xf32>
    %111 = arith.divf %109, %110 : vector<1x32xf32>
    %112 = arith.mulf %106, %106 : vector<1x32xf32>
    %113 = arith.subf %111, %112 : vector<1x32xf32>
    %cst_39 = arith.constant 0.000000e+00 : f32
    %114 = vector.broadcast %cst_39 : f32 to vector<1x32xf32>
    %115 = arith.maximumf %113, %114 : vector<1x32xf32>
    %cst_40 = arith.constant 9.99999974E-6 : f32
    %116 = vector.broadcast %cst_40 : f32 to vector<1x32xf32>
    %117 = arith.addf %115, %116 : vector<1x32xf32>
    %118 = math.rsqrt %117 : vector<1x32xf32>
    %119 = vector.broadcast %106 : vector<1x32xf32> to vector<24x32xf32>
    %120 = arith.subf %102, %119 : vector<24x32xf32>
    %121 = vector.broadcast %118 : vector<1x32xf32> to vector<24x32xf32>
    %122 = arith.mulf %120, %121 : vector<24x32xf32>
    %123 = vector.broadcast %16 : vector<1x32xf32> to vector<24x32xf32>
    %124 = arith.mulf %122, %123 : vector<24x32xf32>
    %125 = vector.broadcast %17 : vector<1x32xf32> to vector<24x32xf32>
    %126 = arith.addf %124, %125 : vector<24x32xf32>
    %127 = arith.truncf %126 : vector<24x32xf32> to vector<24x32xbf16>
    %cst_41 = arith.constant dense<0.000000e+00> : vector<24x8xf32>
    %128 = tpu.matmul %127, %29, %cst_41 {dimension_numbers = #tpu.dot_dimension_numbers<[1], [0], [0], [1], [0, 0, 1, 1], [], []>} : vector<24x32xbf16>, vector<32x8xbf16>, vector<24x8xf32> -> vector<24x8xf32>
    %129 = vector.broadcast %25 : vector<1x8xf32> to vector<24x8xf32>
    %130 = arith.addf %128, %129 : vector<24x8xf32>
    %131 = arith.truncf %59 : vector<24x8xf32> to vector<24x8xbf16>
    %cst_42 = arith.constant dense<0.000000e+00> : vector<24x32xf32>
    %132 = tpu.matmul %131, %27, %cst_42 {dimension_numbers = #tpu.dot_dimension_numbers<[1], [0], [0], [1], [0, 0, 1, 1], [], []>} : vector<24x8xbf16>, vector<8x32xbf16>, vector<24x32xf32> -> vector<24x32xf32>
    %133 = vector.broadcast %12 : vector<1x32xf32> to vector<24x32xf32>
    %134 = arith.addf %132, %133 : vector<24x32xf32>
    %cst_43 = arith.constant 0.000000e+00 : f32
    %135 = vector.broadcast %cst_43 : f32 to vector<24x32xf32>
    %136 = arith.cmpf oge, %134, %135 : vector<24x32xf32>
    %cst_44 = arith.constant 0.00999999977 : f32
    %137 = vector.broadcast %cst_44 : f32 to vector<24x32xf32>
    %138 = arith.mulf %137, %134 : vector<24x32xf32>
    %139 = arith.select %136, %134, %138 : vector<24x32xi1>, vector<24x32xf32>
    %cst_45 = arith.constant dense<0.000000e+00> : vector<32xf32>
    %140 = vector.multi_reduction <add>, %139, %cst_45 [0] : vector<24x32xf32> to vector<32xf32>
    %141 = vector.shape_cast %140 : vector<32xf32> to vector<1x32xf32>
    %cst_46 = arith.constant 2.400000e+01 : f32
    %142 = vector.broadcast %cst_46 : f32 to vector<1x32xf32>
    %143 = arith.divf %141, %142 : vector<1x32xf32>
    %144 = arith.mulf %139, %139 : vector<24x32xf32>
    %cst_47 = arith.constant dense<0.000000e+00> : vector<32xf32>
    %145 = vector.multi_reduction <add>, %144, %cst_47 [0] : vector<24x32xf32> to vector<32xf32>
    %146 = vector.shape_cast %145 : vector<32xf32> to vector<1x32xf32>
    %cst_48 = arith.constant 2.400000e+01 : f32
    %147 = vector.broadcast %cst_48 : f32 to vector<1x32xf32>
    %148 = arith.divf %146, %147 : vector<1x32xf32>
    %149 = arith.mulf %143, %143 : vector<1x32xf32>
    %150 = arith.subf %148, %149 : vector<1x32xf32>
    %cst_49 = arith.constant 0.000000e+00 : f32
    %151 = vector.broadcast %cst_49 : f32 to vector<1x32xf32>
    %152 = arith.maximumf %150, %151 : vector<1x32xf32>
    %cst_50 = arith.constant 9.99999974E-6 : f32
    %153 = vector.broadcast %cst_50 : f32 to vector<1x32xf32>
    %154 = arith.addf %152, %153 : vector<1x32xf32>
    %155 = math.rsqrt %154 : vector<1x32xf32>
    %156 = vector.broadcast %143 : vector<1x32xf32> to vector<24x32xf32>
    %157 = arith.subf %139, %156 : vector<24x32xf32>
    %158 = vector.broadcast %155 : vector<1x32xf32> to vector<24x32xf32>
    %159 = arith.mulf %157, %158 : vector<24x32xf32>
    %160 = vector.broadcast %13 : vector<1x32xf32> to vector<24x32xf32>
    %161 = arith.mulf %159, %160 : vector<24x32xf32>
    %162 = vector.broadcast %14 : vector<1x32xf32> to vector<24x32xf32>
    %163 = arith.addf %161, %162 : vector<24x32xf32>
    %164 = arith.truncf %163 : vector<24x32xf32> to vector<24x32xbf16>
    %cst_51 = arith.constant dense<0.000000e+00> : vector<24x32xf32>
    %165 = tpu.matmul %164, %28, %cst_51 {dimension_numbers = #tpu.dot_dimension_numbers<[1], [0], [0], [1], [0, 0, 1, 1], [], []>} : vector<24x32xbf16>, vector<32x32xbf16>, vector<24x32xf32> -> vector<24x32xf32>
    %166 = vector.broadcast %15 : vector<1x32xf32> to vector<24x32xf32>
    %167 = arith.addf %165, %166 : vector<24x32xf32>
    %cst_52 = arith.constant 0.000000e+00 : f32
    %168 = vector.broadcast %cst_52 : f32 to vector<24x32xf32>
    %169 = arith.cmpf oge, %167, %168 : vector<24x32xf32>
    %cst_53 = arith.constant 0.00999999977 : f32
    %170 = vector.broadcast %cst_53 : f32 to vector<24x32xf32>
    %171 = arith.mulf %170, %167 : vector<24x32xf32>
    %172 = arith.select %169, %167, %171 : vector<24x32xi1>, vector<24x32xf32>
    %cst_54 = arith.constant dense<0.000000e+00> : vector<32xf32>
    %173 = vector.multi_reduction <add>, %172, %cst_54 [0] : vector<24x32xf32> to vector<32xf32>
    %174 = vector.shape_cast %173 : vector<32xf32> to vector<1x32xf32>
    %cst_55 = arith.constant 2.400000e+01 : f32
    %175 = vector.broadcast %cst_55 : f32 to vector<1x32xf32>
    %176 = arith.divf %174, %175 : vector<1x32xf32>
    %177 = arith.mulf %172, %172 : vector<24x32xf32>
    %cst_56 = arith.constant dense<0.000000e+00> : vector<32xf32>
    %178 = vector.multi_reduction <add>, %177, %cst_56 [0] : vector<24x32xf32> to vector<32xf32>
    %179 = vector.shape_cast %178 : vector<32xf32> to vector<1x32xf32>
    %cst_57 = arith.constant 2.400000e+01 : f32
    %180 = vector.broadcast %cst_57 : f32 to vector<1x32xf32>
    %181 = arith.divf %179, %180 : vector<1x32xf32>
    %182 = arith.mulf %176, %176 : vector<1x32xf32>
    %183 = arith.subf %181, %182 : vector<1x32xf32>
    %cst_58 = arith.constant 0.000000e+00 : f32
    %184 = vector.broadcast %cst_58 : f32 to vector<1x32xf32>
    %185 = arith.maximumf %183, %184 : vector<1x32xf32>
    %cst_59 = arith.constant 9.99999974E-6 : f32
    %186 = vector.broadcast %cst_59 : f32 to vector<1x32xf32>
    %187 = arith.addf %185, %186 : vector<1x32xf32>
    %188 = math.rsqrt %187 : vector<1x32xf32>
    %189 = vector.broadcast %176 : vector<1x32xf32> to vector<24x32xf32>
    %190 = arith.subf %172, %189 : vector<24x32xf32>
    %191 = vector.broadcast %188 : vector<1x32xf32> to vector<24x32xf32>
    %192 = arith.mulf %190, %191 : vector<24x32xf32>
    %193 = vector.broadcast %16 : vector<1x32xf32> to vector<24x32xf32>
    %194 = arith.mulf %192, %193 : vector<24x32xf32>
    %195 = vector.broadcast %17 : vector<1x32xf32> to vector<24x32xf32>
    %196 = arith.addf %194, %195 : vector<24x32xf32>
    %197 = arith.truncf %196 : vector<24x32xf32> to vector<24x32xbf16>
    %cst_60 = arith.constant dense<0.000000e+00> : vector<24x8xf32>
    %198 = tpu.matmul %197, %29, %cst_60 {dimension_numbers = #tpu.dot_dimension_numbers<[1], [0], [0], [1], [0, 0, 1, 1], [], []>} : vector<24x32xbf16>, vector<32x8xbf16>, vector<24x8xf32> -> vector<24x8xf32>
    %199 = vector.broadcast %25 : vector<1x8xf32> to vector<24x8xf32>
    %200 = arith.addf %198, %199 : vector<24x8xf32>
    %201 = arith.addf %130, %200 : vector<24x8xf32>
    %202 = arith.truncf %201 : vector<24x8xf32> to vector<24x8xbf16>
    %cst_61 = arith.constant dense<0.000000e+00> : vector<24x32xf32>
    %203 = tpu.matmul %202, %30, %cst_61 {dimension_numbers = #tpu.dot_dimension_numbers<[1], [0], [0], [1], [0, 0, 1, 1], [], []>} : vector<24x8xbf16>, vector<8x32xbf16>, vector<24x32xf32> -> vector<24x32xf32>
    %204 = arith.truncf %60 : vector<24x8xf32> to vector<24x8xbf16>
    %cst_62 = arith.constant dense<0.000000e+00> : vector<24x32xf32>
    %205 = tpu.matmul %204, %32, %cst_62 {dimension_numbers = #tpu.dot_dimension_numbers<[1], [0], [0], [1], [0, 0, 1, 1], [], []>} : vector<24x8xbf16>, vector<8x32xbf16>, vector<24x32xf32> -> vector<24x32xf32>
    %206 = arith.addf %203, %205 : vector<24x32xf32>
    %207 = vector.broadcast %18 : vector<1x32xf32> to vector<24x32xf32>
    %208 = arith.addf %206, %207 : vector<24x32xf32>
    %209 = vector.shape_cast %19 : vector<1x32xf32> to vector<1x32xf32>
    %210 = vector.broadcast %209 : vector<1x32xf32> to vector<24x32xf32>
    %211 = vector.shape_cast %20 : vector<1x32xf32> to vector<1x32xf32>
    %212 = vector.broadcast %211 : vector<1x32xf32> to vector<24x32xf32>
    %213 = vector.shape_cast %21 : vector<1x32xf32> to vector<1x32xf32>
    %214 = vector.broadcast %213 : vector<1x32xf32> to vector<24x32xf32>
    %215 = vector.shape_cast %22 : vector<1x32xf32> to vector<1x32xf32>
    %216 = vector.broadcast %215 : vector<1x32xf32> to vector<24x32xf32>
    %217 = vector.shape_cast %23 : vector<1x32xf32> to vector<1x32xf32>
    %218 = vector.broadcast %217 : vector<1x32xf32> to vector<24x32xf32>
    %219 = vector.shape_cast %26 : vector<1x8xf32> to vector<1x8xf32>
    %220 = vector.broadcast %219 : vector<1x8xf32> to vector<24x8xf32>
    %c0_63 = arith.constant 0 : index
    %c0_64 = arith.constant 0 : index
    %221 = vector.load %arg3[%c0_63, %c0_64] : memref<24x8xf32, #tpu.memory_space<vmem>>, vector<24x8xf32>
    %222 = arith.truncf %221 : vector<24x8xf32> to vector<24x8xbf16>
    %cst_65 = arith.constant dense<0.000000e+00> : vector<24x32xf32>
    %223 = tpu.matmul %222, %31, %cst_65 {dimension_numbers = #tpu.dot_dimension_numbers<[1], [0], [0], [1], [0, 0, 1, 1], [], []>} : vector<24x8xbf16>, vector<8x32xbf16>, vector<24x32xf32> -> vector<24x32xf32>
    %224 = arith.addf %208, %223 : vector<24x32xf32>
    %cst_66 = arith.constant 0.000000e+00 : f32
    %225 = vector.broadcast %cst_66 : f32 to vector<24x32xf32>
    %226 = arith.cmpf oge, %224, %225 : vector<24x32xf32>
    %cst_67 = arith.constant 0.00999999977 : f32
    %227 = vector.broadcast %cst_67 : f32 to vector<24x32xf32>
    %228 = arith.mulf %227, %224 : vector<24x32xf32>
    %229 = arith.select %226, %224, %228 : vector<24x32xi1>, vector<24x32xf32>
    %cst_68 = arith.constant dense<0.000000e+00> : vector<32xf32>
    %230 = vector.multi_reduction <add>, %229, %cst_68 [0] : vector<24x32xf32> to vector<32xf32>
    %231 = vector.shape_cast %230 : vector<32xf32> to vector<1x32xf32>
    %cst_69 = arith.constant 2.400000e+01 : f32
    %232 = vector.broadcast %cst_69 : f32 to vector<1x32xf32>
    %233 = arith.divf %231, %232 : vector<1x32xf32>
    %234 = arith.mulf %229, %229 : vector<24x32xf32>
    %cst_70 = arith.constant dense<0.000000e+00> : vector<32xf32>
    %235 = vector.multi_reduction <add>, %234, %cst_70 [0] : vector<24x32xf32> to vector<32xf32>
    %236 = vector.shape_cast %235 : vector<32xf32> to vector<1x32xf32>
    %cst_71 = arith.constant 2.400000e+01 : f32
    %237 = vector.broadcast %cst_71 : f32 to vector<1x32xf32>
    %238 = arith.divf %236, %237 : vector<1x32xf32>
    %239 = arith.mulf %233, %233 : vector<1x32xf32>
    %240 = arith.subf %238, %239 : vector<1x32xf32>
    %cst_72 = arith.constant 0.000000e+00 : f32
    %241 = vector.broadcast %cst_72 : f32 to vector<1x32xf32>
    %242 = arith.maximumf %240, %241 : vector<1x32xf32>
    %cst_73 = arith.constant 9.99999974E-6 : f32
    %243 = vector.broadcast %cst_73 : f32 to vector<1x32xf32>
    %244 = arith.addf %242, %243 : vector<1x32xf32>
    %245 = math.rsqrt %244 : vector<1x32xf32>
    %246 = vector.broadcast %233 : vector<1x32xf32> to vector<24x32xf32>
    %247 = arith.subf %229, %246 : vector<24x32xf32>
    %248 = vector.broadcast %245 : vector<1x32xf32> to vector<24x32xf32>
    %249 = arith.mulf %247, %248 : vector<24x32xf32>
    %250 = arith.mulf %249, %210 : vector<24x32xf32>
    %251 = arith.addf %250, %212 : vector<24x32xf32>
    %252 = arith.truncf %251 : vector<24x32xf32> to vector<24x32xbf16>
    %cst_74 = arith.constant dense<0.000000e+00> : vector<24x32xf32>
    %253 = tpu.matmul %252, %33, %cst_74 {dimension_numbers = #tpu.dot_dimension_numbers<[1], [0], [0], [1], [0, 0, 1, 1], [], []>} : vector<24x32xbf16>, vector<32x32xbf16>, vector<24x32xf32> -> vector<24x32xf32>
    %254 = arith.addf %253, %214 : vector<24x32xf32>
    %cst_75 = arith.constant 0.000000e+00 : f32
    %255 = vector.broadcast %cst_75 : f32 to vector<24x32xf32>
    %256 = arith.cmpf oge, %254, %255 : vector<24x32xf32>
    %cst_76 = arith.constant 0.00999999977 : f32
    %257 = vector.broadcast %cst_76 : f32 to vector<24x32xf32>
    %258 = arith.mulf %257, %254 : vector<24x32xf32>
    %259 = arith.select %256, %254, %258 : vector<24x32xi1>, vector<24x32xf32>
    %cst_77 = arith.constant dense<0.000000e+00> : vector<32xf32>
    %260 = vector.multi_reduction <add>, %259, %cst_77 [0] : vector<24x32xf32> to vector<32xf32>
    %261 = vector.shape_cast %260 : vector<32xf32> to vector<1x32xf32>
    %cst_78 = arith.constant 2.400000e+01 : f32
    %262 = vector.broadcast %cst_78 : f32 to vector<1x32xf32>
    %263 = arith.divf %261, %262 : vector<1x32xf32>
    %264 = arith.mulf %259, %259 : vector<24x32xf32>
    %cst_79 = arith.constant dense<0.000000e+00> : vector<32xf32>
    %265 = vector.multi_reduction <add>, %264, %cst_79 [0] : vector<24x32xf32> to vector<32xf32>
    %266 = vector.shape_cast %265 : vector<32xf32> to vector<1x32xf32>
    %cst_80 = arith.constant 2.400000e+01 : f32
    %267 = vector.broadcast %cst_80 : f32 to vector<1x32xf32>
    %268 = arith.divf %266, %267 : vector<1x32xf32>
    %269 = arith.mulf %263, %263 : vector<1x32xf32>
    %270 = arith.subf %268, %269 : vector<1x32xf32>
    %cst_81 = arith.constant 0.000000e+00 : f32
    %271 = vector.broadcast %cst_81 : f32 to vector<1x32xf32>
    %272 = arith.maximumf %270, %271 : vector<1x32xf32>
    %cst_82 = arith.constant 9.99999974E-6 : f32
    %273 = vector.broadcast %cst_82 : f32 to vector<1x32xf32>
    %274 = arith.addf %272, %273 : vector<1x32xf32>
    %275 = math.rsqrt %274 : vector<1x32xf32>
    %276 = vector.broadcast %263 : vector<1x32xf32> to vector<24x32xf32>
    %277 = arith.subf %259, %276 : vector<24x32xf32>
    %278 = vector.broadcast %275 : vector<1x32xf32> to vector<24x32xf32>
    %279 = arith.mulf %277, %278 : vector<24x32xf32>
    %280 = arith.mulf %279, %216 : vector<24x32xf32>
    %281 = arith.addf %280, %218 : vector<24x32xf32>
    %282 = arith.truncf %281 : vector<24x32xf32> to vector<24x32xbf16>
    %cst_83 = arith.constant dense<0.000000e+00> : vector<24x8xf32>
    %283 = tpu.matmul %282, %34, %cst_83 {dimension_numbers = #tpu.dot_dimension_numbers<[1], [0], [0], [1], [0, 0, 1, 1], [], []>} : vector<24x32xbf16>, vector<32x8xbf16>, vector<24x8xf32> -> vector<24x8xf32>
    %284 = arith.addf %283, %220 : vector<24x8xf32>
    %285 = arith.truncf %284 : vector<24x8xf32> to vector<24x8xbf16>
    %cst_84 = arith.constant dense<0.000000e+00> : vector<24x32xf32>
    %286 = tpu.matmul %285, %31, %cst_84 {dimension_numbers = #tpu.dot_dimension_numbers<[1], [0], [0], [1], [0, 0, 1, 1], [], []>} : vector<24x8xbf16>, vector<8x32xbf16>, vector<24x32xf32> -> vector<24x32xf32>
    %287 = arith.addf %208, %286 : vector<24x32xf32>
    %cst_85 = arith.constant 0.000000e+00 : f32
    %288 = vector.broadcast %cst_85 : f32 to vector<24x32xf32>
    %289 = arith.cmpf oge, %287, %288 : vector<24x32xf32>
    %cst_86 = arith.constant 0.00999999977 : f32
    %290 = vector.broadcast %cst_86 : f32 to vector<24x32xf32>
    %291 = arith.mulf %290, %287 : vector<24x32xf32>
    %292 = arith.select %289, %287, %291 : vector<24x32xi1>, vector<24x32xf32>
    %cst_87 = arith.constant dense<0.000000e+00> : vector<32xf32>
    %293 = vector.multi_reduction <add>, %292, %cst_87 [0] : vector<24x32xf32> to vector<32xf32>
    %294 = vector.shape_cast %293 : vector<32xf32> to vector<1x32xf32>
    %cst_88 = arith.constant 2.400000e+01 : f32
    %295 = vector.broadcast %cst_88 : f32 to vector<1x32xf32>
    %296 = arith.divf %294, %295 : vector<1x32xf32>
    %297 = arith.mulf %292, %292 : vector<24x32xf32>
    %cst_89 = arith.constant dense<0.000000e+00> : vector<32xf32>
    %298 = vector.multi_reduction <add>, %297, %cst_89 [0] : vector<24x32xf32> to vector<32xf32>
    %299 = vector.shape_cast %298 : vector<32xf32> to vector<1x32xf32>
    %cst_90 = arith.constant 2.400000e+01 : f32
    %300 = vector.broadcast %cst_90 : f32 to vector<1x32xf32>
    %301 = arith.divf %299, %300 : vector<1x32xf32>
    %302 = arith.mulf %296, %296 : vector<1x32xf32>
    %303 = arith.subf %301, %302 : vector<1x32xf32>
    %cst_91 = arith.constant 0.000000e+00 : f32
    %304 = vector.broadcast %cst_91 : f32 to vector<1x32xf32>
    %305 = arith.maximumf %303, %304 : vector<1x32xf32>
    %cst_92 = arith.constant 9.99999974E-6 : f32
    %306 = vector.broadcast %cst_92 : f32 to vector<1x32xf32>
    %307 = arith.addf %305, %306 : vector<1x32xf32>
    %308 = math.rsqrt %307 : vector<1x32xf32>
    %309 = vector.broadcast %296 : vector<1x32xf32> to vector<24x32xf32>
    %310 = arith.subf %292, %309 : vector<24x32xf32>
    %311 = vector.broadcast %308 : vector<1x32xf32> to vector<24x32xf32>
    %312 = arith.mulf %310, %311 : vector<24x32xf32>
    %313 = arith.mulf %312, %210 : vector<24x32xf32>
    %314 = arith.addf %313, %212 : vector<24x32xf32>
    %315 = arith.truncf %314 : vector<24x32xf32> to vector<24x32xbf16>
    %cst_93 = arith.constant dense<0.000000e+00> : vector<24x32xf32>
    %316 = tpu.matmul %315, %33, %cst_93 {dimension_numbers = #tpu.dot_dimension_numbers<[1], [0], [0], [1], [0, 0, 1, 1], [], []>} : vector<24x32xbf16>, vector<32x32xbf16>, vector<24x32xf32> -> vector<24x32xf32>
    %317 = arith.addf %316, %214 : vector<24x32xf32>
    %cst_94 = arith.constant 0.000000e+00 : f32
    %318 = vector.broadcast %cst_94 : f32 to vector<24x32xf32>
    %319 = arith.cmpf oge, %317, %318 : vector<24x32xf32>
    %cst_95 = arith.constant 0.00999999977 : f32
    %320 = vector.broadcast %cst_95 : f32 to vector<24x32xf32>
    %321 = arith.mulf %320, %317 : vector<24x32xf32>
    %322 = arith.select %319, %317, %321 : vector<24x32xi1>, vector<24x32xf32>
    %cst_96 = arith.constant dense<0.000000e+00> : vector<32xf32>
    %323 = vector.multi_reduction <add>, %322, %cst_96 [0] : vector<24x32xf32> to vector<32xf32>
    %324 = vector.shape_cast %323 : vector<32xf32> to vector<1x32xf32>
    %cst_97 = arith.constant 2.400000e+01 : f32
    %325 = vector.broadcast %cst_97 : f32 to vector<1x32xf32>
    %326 = arith.divf %324, %325 : vector<1x32xf32>
    %327 = arith.mulf %322, %322 : vector<24x32xf32>
    %cst_98 = arith.constant dense<0.000000e+00> : vector<32xf32>
    %328 = vector.multi_reduction <add>, %327, %cst_98 [0] : vector<24x32xf32> to vector<32xf32>
    %329 = vector.shape_cast %328 : vector<32xf32> to vector<1x32xf32>
    %cst_99 = arith.constant 2.400000e+01 : f32
    %330 = vector.broadcast %cst_99 : f32 to vector<1x32xf32>
    %331 = arith.divf %329, %330 : vector<1x32xf32>
    %332 = arith.mulf %326, %326 : vector<1x32xf32>
    %333 = arith.subf %331, %332 : vector<1x32xf32>
    %cst_100 = arith.constant 0.000000e+00 : f32
    %334 = vector.broadcast %cst_100 : f32 to vector<1x32xf32>
    %335 = arith.maximumf %333, %334 : vector<1x32xf32>
    %cst_101 = arith.constant 9.99999974E-6 : f32
    %336 = vector.broadcast %cst_101 : f32 to vector<1x32xf32>
    %337 = arith.addf %335, %336 : vector<1x32xf32>
    %338 = math.rsqrt %337 : vector<1x32xf32>
    %339 = vector.broadcast %326 : vector<1x32xf32> to vector<24x32xf32>
    %340 = arith.subf %322, %339 : vector<24x32xf32>
    %341 = vector.broadcast %338 : vector<1x32xf32> to vector<24x32xf32>
    %342 = arith.mulf %340, %341 : vector<24x32xf32>
    %343 = arith.mulf %342, %216 : vector<24x32xf32>
    %344 = arith.addf %343, %218 : vector<24x32xf32>
    %345 = arith.truncf %344 : vector<24x32xf32> to vector<24x32xbf16>
    %cst_102 = arith.constant dense<0.000000e+00> : vector<24x8xf32>
    %346 = tpu.matmul %345, %34, %cst_102 {dimension_numbers = #tpu.dot_dimension_numbers<[1], [0], [0], [1], [0, 0, 1, 1], [], []>} : vector<24x32xbf16>, vector<32x8xbf16>, vector<24x8xf32> -> vector<24x8xf32>
    %347 = arith.addf %346, %220 : vector<24x8xf32>
    %348 = arith.truncf %347 : vector<24x8xf32> to vector<24x8xbf16>
    %cst_103 = arith.constant dense<0.000000e+00> : vector<24x32xf32>
    %349 = tpu.matmul %348, %31, %cst_103 {dimension_numbers = #tpu.dot_dimension_numbers<[1], [0], [0], [1], [0, 0, 1, 1], [], []>} : vector<24x8xbf16>, vector<8x32xbf16>, vector<24x32xf32> -> vector<24x32xf32>
    %350 = arith.addf %208, %349 : vector<24x32xf32>
    %cst_104 = arith.constant 0.000000e+00 : f32
    %351 = vector.broadcast %cst_104 : f32 to vector<24x32xf32>
    %352 = arith.cmpf oge, %350, %351 : vector<24x32xf32>
    %cst_105 = arith.constant 0.00999999977 : f32
    %353 = vector.broadcast %cst_105 : f32 to vector<24x32xf32>
    %354 = arith.mulf %353, %350 : vector<24x32xf32>
    %355 = arith.select %352, %350, %354 : vector<24x32xi1>, vector<24x32xf32>
    %cst_106 = arith.constant dense<0.000000e+00> : vector<32xf32>
    %356 = vector.multi_reduction <add>, %355, %cst_106 [0] : vector<24x32xf32> to vector<32xf32>
    %357 = vector.shape_cast %356 : vector<32xf32> to vector<1x32xf32>
    %cst_107 = arith.constant 2.400000e+01 : f32
    %358 = vector.broadcast %cst_107 : f32 to vector<1x32xf32>
    %359 = arith.divf %357, %358 : vector<1x32xf32>
    %360 = arith.mulf %355, %355 : vector<24x32xf32>
    %cst_108 = arith.constant dense<0.000000e+00> : vector<32xf32>
    %361 = vector.multi_reduction <add>, %360, %cst_108 [0] : vector<24x32xf32> to vector<32xf32>
    %362 = vector.shape_cast %361 : vector<32xf32> to vector<1x32xf32>
    %cst_109 = arith.constant 2.400000e+01 : f32
    %363 = vector.broadcast %cst_109 : f32 to vector<1x32xf32>
    %364 = arith.divf %362, %363 : vector<1x32xf32>
    %365 = arith.mulf %359, %359 : vector<1x32xf32>
    %366 = arith.subf %364, %365 : vector<1x32xf32>
    %cst_110 = arith.constant 0.000000e+00 : f32
    %367 = vector.broadcast %cst_110 : f32 to vector<1x32xf32>
    %368 = arith.maximumf %366, %367 : vector<1x32xf32>
    %cst_111 = arith.constant 9.99999974E-6 : f32
    %369 = vector.broadcast %cst_111 : f32 to vector<1x32xf32>
    %370 = arith.addf %368, %369 : vector<1x32xf32>
    %371 = math.rsqrt %370 : vector<1x32xf32>
    %372 = vector.broadcast %359 : vector<1x32xf32> to vector<24x32xf32>
    %373 = arith.subf %355, %372 : vector<24x32xf32>
    %374 = vector.broadcast %371 : vector<1x32xf32> to vector<24x32xf32>
    %375 = arith.mulf %373, %374 : vector<24x32xf32>
    %376 = arith.mulf %375, %210 : vector<24x32xf32>
    %377 = arith.addf %376, %212 : vector<24x32xf32>
    %378 = arith.truncf %377 : vector<24x32xf32> to vector<24x32xbf16>
    %cst_112 = arith.constant dense<0.000000e+00> : vector<24x32xf32>
    %379 = tpu.matmul %378, %33, %cst_112 {dimension_numbers = #tpu.dot_dimension_numbers<[1], [0], [0], [1], [0, 0, 1, 1], [], []>} : vector<24x32xbf16>, vector<32x32xbf16>, vector<24x32xf32> -> vector<24x32xf32>
    %380 = arith.addf %379, %214 : vector<24x32xf32>
    %cst_113 = arith.constant 0.000000e+00 : f32
    %381 = vector.broadcast %cst_113 : f32 to vector<24x32xf32>
    %382 = arith.cmpf oge, %380, %381 : vector<24x32xf32>
    %cst_114 = arith.constant 0.00999999977 : f32
    %383 = vector.broadcast %cst_114 : f32 to vector<24x32xf32>
    %384 = arith.mulf %383, %380 : vector<24x32xf32>
    %385 = arith.select %382, %380, %384 : vector<24x32xi1>, vector<24x32xf32>
    %cst_115 = arith.constant dense<0.000000e+00> : vector<32xf32>
    %386 = vector.multi_reduction <add>, %385, %cst_115 [0] : vector<24x32xf32> to vector<32xf32>
    %387 = vector.shape_cast %386 : vector<32xf32> to vector<1x32xf32>
    %cst_116 = arith.constant 2.400000e+01 : f32
    %388 = vector.broadcast %cst_116 : f32 to vector<1x32xf32>
    %389 = arith.divf %387, %388 : vector<1x32xf32>
    %390 = arith.mulf %385, %385 : vector<24x32xf32>
    %cst_117 = arith.constant dense<0.000000e+00> : vector<32xf32>
    %391 = vector.multi_reduction <add>, %390, %cst_117 [0] : vector<24x32xf32> to vector<32xf32>
    %392 = vector.shape_cast %391 : vector<32xf32> to vector<1x32xf32>
    %cst_118 = arith.constant 2.400000e+01 : f32
    %393 = vector.broadcast %cst_118 : f32 to vector<1x32xf32>
    %394 = arith.divf %392, %393 : vector<1x32xf32>
    %395 = arith.mulf %389, %389 : vector<1x32xf32>
    %396 = arith.subf %394, %395 : vector<1x32xf32>
    %cst_119 = arith.constant 0.000000e+00 : f32
    %397 = vector.broadcast %cst_119 : f32 to vector<1x32xf32>
    %398 = arith.maximumf %396, %397 : vector<1x32xf32>
    %cst_120 = arith.constant 9.99999974E-6 : f32
    %399 = vector.broadcast %cst_120 : f32 to vector<1x32xf32>
    %400 = arith.addf %398, %399 : vector<1x32xf32>
    %401 = math.rsqrt %400 : vector<1x32xf32>
    %402 = vector.broadcast %389 : vector<1x32xf32> to vector<24x32xf32>
    %403 = arith.subf %385, %402 : vector<24x32xf32>
    %404 = vector.broadcast %401 : vector<1x32xf32> to vector<24x32xf32>
    %405 = arith.mulf %403, %404 : vector<24x32xf32>
    %406 = arith.mulf %405, %216 : vector<24x32xf32>
    %407 = arith.addf %406, %218 : vector<24x32xf32>
    %408 = arith.truncf %407 : vector<24x32xf32> to vector<24x32xbf16>
    %cst_121 = arith.constant dense<0.000000e+00> : vector<24x8xf32>
    %409 = tpu.matmul %408, %34, %cst_121 {dimension_numbers = #tpu.dot_dimension_numbers<[1], [0], [0], [1], [0, 0, 1, 1], [], []>} : vector<24x32xbf16>, vector<32x8xbf16>, vector<24x8xf32> -> vector<24x8xf32>
    %410 = arith.addf %409, %220 : vector<24x8xf32>
    %c0_122 = arith.constant 0 : index
    %c0_123 = arith.constant 0 : index
    %411 = vector.load %arg9[%c0_122, %c0_123] : memref<24x8xf32, #tpu.memory_space<vmem>>, vector<24x8xf32>
    tpu.vector_store %arg9[%c0_122, %c0_123], %410 {strides = array<i32>} : memref<24x8xf32, #tpu.memory_space<vmem>>, vector<24x8xf32>,
    return
  }
}

</mosaic_0001>

<llo_original>
// kernel: gnn_forward.1
$region0: #{gnn_forward.1}
  #allocation0 [shape = 'u32[]', space=smem, size = 0x4, offset = 0x4, fixed_abs, tag = 'smem constant byte address 0x4 - core index']
  #allocation1 [shape = 'u32[72,128]{1,0:T(1,128)}', space=vmem, size = 0x9000, scoped, tag = 'internal scratch']
  %s0 = inlined_call_operand.vmem [shape: f32[10,8], index: 0, kind: input, shape index: {}]
  %s1 = inlined_call_operand.vmem [shape: f32[2,8], index: 1, kind: input, shape index: {}]
  %s2 = inlined_call_operand.vmem [shape: s32[24,3], index: 2, kind: input, shape index: {}]
  %s3 = inlined_call_operand.vmem [shape: f32[24,8], index: 3, kind: input, shape index: {}, may-alias: {3,9}]
  %s4 = inlined_call_operand.vmem [shape: f32[32,32], index: 4, kind: input, shape index: {}]
  %s5 = inlined_call_operand.vmem [shape: f32[64,32], index: 5, kind: input, shape index: {}]
  %s6 = inlined_call_operand.vmem [shape: f32[32,16], index: 6, kind: input, shape index: {}]
  %s7 = inlined_call_operand.vmem [shape: f32[12,32], index: 7, kind: input, shape index: {}]
  %s8 = inlined_call_operand.vmem [shape: f32[2,8], index: 8, kind: input, shape index: {}]
  %s9 = inlined_call_operand.vmem [shape: f32[24,8], index: 9, kind: output, shape index: {}, may-alias: {3,9}]
  %s10 = sld [smem:[#allocation0]]
  $region46: #{gnn_forward.1} parent=0
    _
  %s12 = ssub.s32 1, %s10
  %s13 = scalar_select 0, %s12, %s10
  // Predicated region
  $region2: #{gnn_forward.1} parent=0 // pred_check
    _
  $region3: #{gnn_forward.1} parent=0 // pred_check_branch
    %15 = sbr.rel (0) target = $region5
  $region4: #{gnn_forward.1} parent=0 // pred_region
    _
  $region5: #{gnn_forward.1} parent=0 // pred_fallthru
    _
  // Predicated region
  $region6: #{gnn_forward.1} parent=0 // pred_check
    _
  $region7: #{gnn_forward.1} parent=0 // pred_check_branch
    %17 = sbr.rel (0) target = $region9
  $region8: #{gnn_forward.1} parent=0 // pred_region
    _
  $region9: #{gnn_forward.1} parent=0 // pred_fallthru
    _
  // Predicated region
  $region10: #{gnn_forward.1} parent=0 // pred_check
    _
  $region11: #{gnn_forward.1} parent=0 // pred_check_branch
    %19 = sbr.rel (0) target = $region13
  $region12: #{gnn_forward.1} parent=0 // pred_region
    _
  $region13: #{gnn_forward.1} parent=0 // pred_fallthru
    _
  // Predicated region
  $region14: #{gnn_forward.1} parent=0 // pred_check
    _
  $region15: #{gnn_forward.1} parent=0 // pred_check_branch
    %21 = sbr.rel (0) target = $region17
  $region16: #{gnn_forward.1} parent=0 // pred_region
    _
  $region17: #{gnn_forward.1} parent=0 // pred_fallthru
    _
  // Predicated region
  $region18: #{gnn_forward.1} parent=0 // pred_check
    _
  $region19: #{gnn_forward.1} parent=0 // pred_check_branch
    %23 = sbr.rel (0) target = $region21
  $region20: #{gnn_forward.1} parent=0 // pred_region
    _
  $region21: #{gnn_forward.1} parent=0 // pred_fallthru
    _
  // Predicated region
  $region22: #{gnn_forward.1} parent=0 // pred_check
    _
  $region23: #{gnn_forward.1} parent=0 // pred_check_branch
    %25 = sbr.rel (0) target = $region25
  $region24: #{gnn_forward.1} parent=0 // pred_region
    _
  $region25: #{gnn_forward.1} parent=0 // pred_fallthru
    _
  // Predicated region
  $region26: #{gnn_forward.1} parent=0 // pred_check
    _
  $region27: #{gnn_forward.1} parent=0 // pred_check_branch
    %27 = sbr.rel (0) target = $region29
  $region28: #{gnn_forward.1} parent=0 // pred_region
    _
  $region29: #{gnn_forward.1} parent=0 // pred_fallthru
    _
  // Predicated region
  $region30: #{gnn_forward.1} parent=0 // pred_check
    _
  $region31: #{gnn_forward.1} parent=0 // pred_check_branch
    %29 = sbr.rel (0) target = $region33
  $region32: #{gnn_forward.1} parent=0 // pred_region
    _
  $region33: #{gnn_forward.1} parent=0 // pred_fallthru
    _
  // Predicated region
  $region34: #{gnn_forward.1} parent=0 // pred_check
    _
  $region35: #{gnn_forward.1} parent=0 // pred_check_branch
    %31 = sbr.rel (0) target = $region37
  $region36: #{gnn_forward.1} parent=0 // pred_region
    _
  $region37: #{gnn_forward.1} parent=0 // pred_fallthru
    _
  %v33 = vld [vmem:[%s4] sm:$0xff]
  %v34 = vld [vmem:[%s4 + $0x8] sm:$0xff]
  %v35 = vld [vmem:[%s4 + $0x10] sm:$0xff]
  %v36 = vld [vmem:[%s4 + $0x18] sm:$0xff]
  %v37 = vld [vmem:[%s5] sm:$0xff]
  %v38 = vld [vmem:[%s5 + $0x8] sm:$0xff]
  %v39 = vld [vmem:[%s5 + $0x10] sm:$0xff]
  %v40 = vld [vmem:[%s5 + $0x18] sm:$0xff]
  %v41 = vld [vmem:[%s5 + $0x20] sm:$0xff]
  %v42 = vld [vmem:[%s5 + $0x28] sm:$0xff]
  %v43 = vld [vmem:[%s5 + $0x30] sm:$0xff]
  %v44 = vld [vmem:[%s5 + $0x38] sm:$0xff]
  %v45 = vld [vmem:[%s6] sm:$0xff]
  %v46 = vld [vmem:[%s6 + $0x8] sm:$0xff]
  %v47 = vld [vmem:[%s6 + $0x10] sm:$0xff]
  %v48 = vld [vmem:[%s6 + $0x18] sm:$0xff]
  %v49 = vld [vmem:[%s7] sm:$0xff]
  %v50 = vld [vmem:[%s7 + $0x8] sm:$0xf]
  %v51 = vld [vmem:[%s8] sm:$0x3]
  %v52 = vpack.c.bf16 %v33, %v33
  %v53 = vpack.c.bf16 %v38, %v37
  %v54 = vpack.c.bf16 %v40, %v39
  %v55 = vpack.c.bf16 %v46, %v45
  %v56 = vpack.c.bf16 %v48, %v47
  %v57 = vpack.c.bf16 %v34, %v34
  %v58 = vpack.c.bf16 %v35, %v35
  %v59 = vpack.c.bf16 %v36, %v36
  %v60 = vpack.c.bf16 %v42, %v41
  %v61 = vpack.c.bf16 %v44, %v43
  %v62 = vld [vmem:[%s2] sm:$0xff]
  %v63 = vld [vmem:[%s2 + $0x8] sm:$0xff]
  %v64 = vld [vmem:[%s2 + $0x10] sm:$0xff]
  %v65 = vlaneseq
  %v66 = vand.u32 %v65, 127
  %67 = vset.pattern.permute.xlu0 0
  %68 = vperm.xlu0 %67, %v62
  %v69 = vpop.permute.xlu0 %68
  %70 = vset.pattern.permute.xlu0 0
  %71 = vperm.xlu0 %70, %v63
  %v72 = vpop.permute.xlu0 %71
  %73 = vset.pattern.permute.xlu0 0
  %74 = vperm.xlu0 %73, %v64
  %v75 = vpop.permute.xlu0 %74
  %vm76 = vcmp.eq.s32.totalorder %v66, %v69
  %vm77 = vcmp.eq.s32.totalorder %v66, %v72
  %vm78 = vcmp.eq.s32.totalorder %v66, %v75
  %v79 = vsel %vm76, 1.0, 0.0
  %v80 = vsel %vm77, 1.0, 0.0
  %v81 = vsel %vm78, 1.0, 0.0
  %82 = vset.pattern.permute.xlu0 1
  %83 = vperm.xlu0 %82, %v62
  %v84 = vpop.permute.xlu0 %83
  %85 = vset.pattern.permute.xlu0 1
  %86 = vperm.xlu0 %85, %v63
  %v87 = vpop.permute.xlu0 %86
  %88 = vset.pattern.permute.xlu0 1
  %89 = vperm.xlu0 %88, %v64
  %v90 = vpop.permute.xlu0 %89
  %vm91 = vcmp.eq.s32.totalorder %v66, %v84
  %vm92 = vcmp.eq.s32.totalorder %v66, %v87
  %vm93 = vcmp.eq.s32.totalorder %v66, %v90
  %v94 = vsel %vm91, 1.0, 0.0
  %v95 = vsel %vm92, 1.0, 0.0
  %v96 = vsel %vm93, 1.0, 0.0
  %97 = vset.pattern.permute.xlu0 2
  %98 = vperm.xlu0 %97, %v62
  %v99 = vpop.permute.xlu0 %98
  %100 = vset.pattern.permute.xlu0 2
  %101 = vperm.xlu0 %100, %v63
  %v102 = vpop.permute.xlu0 %101
  %103 = vset.pattern.permute.xlu0 2
  %104 = vperm.xlu0 %103, %v64
  %v105 = vpop.permute.xlu0 %104
  %vm106 = vcmp.eq.s32.totalorder %v66, %v99
  %vm107 = vcmp.eq.s32.totalorder %v66, %v102
  %vm108 = vcmp.eq.s32.totalorder %v66, %v105
  %v109 = vsel %vm106, 1.0, 0.0
  %v110 = vsel %vm107, 1.0, 0.0
  %v111 = vsel %vm108, 1.0, 0.0
  %v112 = vld [vmem:[%s0] sm:$0xff]
  %v113 = vld [vmem:[%s0 + $0x8] sm:$0x3]
  %v114 = vld [vmem:[%s1] sm:$0x3]
  %vm115 = vcmask 80896
  %v117 = vsel %vm115, %v79, 0
  %v120 = vsel %vm115, %v80, 0
  %v123 = vsel %vm115, %v81, 0
  %vm125 = vcmask 1041408
  %v127 = vsel %vm125, %v113, 0
  %129 = vmatpush.msra.mxu0 0.0
  %130 = vmatpush.msra.mxu0 0.0
  %131 = vmatpush.msra.mxu0 0.0
  %132 = vmatpush.msra.mxu0 0.0
  %133 = vmatpush.msra.mxu0 0.0
  %134 = vmatpush.msra.mxu0 0.0
  %135 = vmatpush.msra.mxu0 0.0
  %136 = vmatpush.msra.mxu0 0.0
  %137 = vmatpush.msra.mxu0 0.0
  %138 = vmatpush.msra.mxu0 0.0
  %139 = vmatpush.msra.mxu0 0.0
  %140 = vmatpush.msra.mxu0 0.0
  %141 = vmatpush.msra.mxu0 0.0
  %142 = vmatpush.msra.mxu0 0.0
  %143 = vmatpush.msra.mxu0 %v127
  %144 = vmatpush.msra.mxu0 %v112
  %145 = vmatmul.f32.gmra.mxu0 %v117
  %v146 = vpop.f32.mrf.mxu0
  %v147 = vadd.f32 0.0, %v146
  %148 = vmatmul.f32.gmra.mxu0 %v120
  %v149 = vpop.f32.mrf.mxu0
  %v150 = vadd.f32 0.0, %v149
  %151 = vmatmul.f32.gmra.mxu0 %v123
  %v152 = vpop.f32.mrf.mxu0
  %v153 = vadd.f32 0.0, %v152
  %154 = vdwg.mxu0
  %v156 = vsel %vm115, %v94, 0
  %v159 = vsel %vm115, %v95, 0
  %v162 = vsel %vm115, %v96, 0
  %164 = vmatpush.msra.mxu0 0.0
  %165 = vmatpush.msra.mxu0 0.0
  %166 = vmatpush.msra.mxu0 0.0
  %167 = vmatpush.msra.mxu0 0.0
  %168 = vmatpush.msra.mxu0 0.0
  %169 = vmatpush.msra.mxu0 0.0
  %170 = vmatpush.msra.mxu0 0.0
  %171 = vmatpush.msra.mxu0 0.0
  %172 = vmatpush.msra.mxu0 0.0
  %173 = vmatpush.msra.mxu0 0.0
  %174 = vmatpush.msra.mxu0 0.0
  %175 = vmatpush.msra.mxu0 0.0
  %176 = vmatpush.msra.mxu0 0.0
  %177 = vmatpush.msra.mxu0 0.0
  %178 = vmatpush.msra.mxu0 %v127
  %179 = vmatpush.msra.mxu0 %v112
  %180 = vmatmul.f32.gmra.mxu0 %v156
  %v181 = vpop.f32.mrf.mxu0
  %v182 = vadd.f32 0.0, %v181
  %183 = vmatmul.f32.gmra.mxu0 %v159
  %v184 = vpop.f32.mrf.mxu0
  %v185 = vadd.f32 0.0, %v184
  %186 = vmatmul.f32.gmra.mxu0 %v162
  %v187 = vpop.f32.mrf.mxu0
  %v188 = vadd.f32 0.0, %v187
  %189 = vdwg.mxu0
  %vm190 = vcmask 15360
  %v192 = vsel %vm190, %v109, 0
  %v195 = vsel %vm190, %v110, 0
  %v198 = vsel %vm190, %v111, 0
  %v201 = vsel %vm125, %v114, 0
  %203 = vmatpush.msra.mxu0 0.0
  %204 = vmatpush.msra.mxu0 0.0
  %205 = vmatpush.msra.mxu0 0.0
  %206 = vmatpush.msra.mxu0 0.0
  %207 = vmatpush.msra.mxu0 0.0
  %208 = vmatpush.msra.mxu0 0.0
  %209 = vmatpush.msra.mxu0 0.0
  %210 = vmatpush.msra.mxu0 0.0
  %211 = vmatpush.msra.mxu0 0.0
  %212 = vmatpush.msra.mxu0 0.0
  %213 = vmatpush.msra.mxu0 0.0
  %214 = vmatpush.msra.mxu0 0.0
  %215 = vmatpush.msra.mxu0 0.0
  %216 = vmatpush.msra.mxu0 0.0
  %217 = vmatpush.msra.mxu0 0.0
  %218 = vmatpush.msra.mxu0 %v201
  %219 = vmatmul.f32.gmra.mxu0 %v192
  %v220 = vpop.f32.mrf.mxu0
  %v221 = vadd.f32 0.0, %v220
  %222 = vmatmul.f32.gmra.mxu0 %v195
  %v223 = vpop.f32.mrf.mxu0
  %v224 = vadd.f32 0.0, %v223
  %225 = vmatmul.f32.gmra.mxu0 %v198
  %v226 = vpop.f32.mrf.mxu0
  %v227 = vadd.f32 0.0, %v226
  %228 = vdwg.mxu0
  %v229 = vpack.c.bf16 %v150, %v147
  %v230 = vpack.c.bf16 %v153, %v153
  %v231 = vperm.slane %v49, 0
  %vm232 = vcmask 64512
  %v234 = vsel %vm232, %v229, 0
  %v237 = vsel %vm232, %v230, 0
  %vm239 = vcmask 1043456
  %v241 = vsel %vm239, %v52, 0
  %243 = vmatpush.bf16.msra.mxu0 0
  %244 = vmatpush.bf16.msra.mxu0 0
  %245 = vmatpush.bf16.msra.mxu0 0
  %246 = vmatpush.bf16.msra.mxu0 0
  %247 = vmatpush.bf16.msra.mxu0 0
  %248 = vmatpush.bf16.msra.mxu0 0
  %249 = vmatpush.bf16.msra.mxu0 0
  %250 = vmatpush.bf16.msra.mxu0 %v241
  %251 = vmatmul.bf16.gmra.mxu0 %v234
  %v252 = vpop.f32.mrf.mxu0
  %v253 = vadd.f32 %v231, %v252
  %v254 = vpop.f32.mrf.mxu0
  %v255 = vadd.f32 %v231, %v254
  %256 = vmatmul.bf16.gmra.mxu0 %v237
  %v257 = vpop.f32.mrf.mxu0
  %v258 = vadd.f32 %v231, %v257
  %v259 = vpop.f32.mrf.mxu0
  %260 = vdwg.mxu0
  %vm261 = vcmp.ge.f32.partialorder %v253, 0.0
  %vm262 = vcmp.ge.f32.partialorder %v255, 0.0
  %vm263 = vcmp.ge.f32.partialorder %v258, 0.0
  %v264 = vmul.f32 %v253, 0.01
  %v265 = vmul.f32 %v255, 0.01
  %v266 = vmul.f32 %v258, 0.01
  %v267 = vsel %vm261, %v253, %v264
  %v268 = vsel %vm262, %v255, %v265
  %v269 = vsel %vm263, %v258, %v266
  %vm270 = vcmask 261120
  %v271 = vsel %vm270, %v267, 0.0
  %v272 = vsel %vm270, %v268, 0.0
  %v273 = vadd.f32 %v271, %v272
  %v274 = vsel %vm270, %v269, 0.0
  %v275 = vadd.f32 %v273, %v274
  %v276 = vrot.slane %v275, 4
  %v277 = vadd.f32 %v275, %v276
  %v278 = vrot.slane %v277, 2
  %v279 = vadd.f32 %v277, %v278
  %v280 = vrot.slane %v279, 1
  %v281 = vadd.f32 %v279, %v280
  %v282 = vrcp.pop 24.0
  %v283 = vmul.f32 24.0, %v282
  %v284 = vsub.f32 1.0, %v283
  %v285 = vmul.f32 %v282, %v284
  %v286 = vadd.f32 %v282, %v285
  %vm287 = vweird.f32 %v282
  %v288 = vsel %vm287, %v282, %v286
  %v289 = vmul.f32 %v281, %v288
  %v290 = vmul.f32 %v267, %v267
  %v291 = vmul.f32 %v268, %v268
  %v292 = vmul.f32 %v269, %v269
  %v293 = vsel %vm270, %v290, 0.0
  %v294 = vsel %vm270, %v291, 0.0
  %v295 = vadd.f32 %v293, %v294
  %v296 = vsel %vm270, %v292, 0.0
  %v297 = vadd.f32 %v295, %v296
  %v298 = vrot.slane %v297, 4
  %v299 = vadd.f32 %v297, %v298
  %v300 = vrot.slane %v299, 2
  %v301 = vadd.f32 %v299, %v300
  %v302 = vrot.slane %v301, 1
  %v303 = vadd.f32 %v301, %v302
  %v304 = vmul.f32 %v303, %v288
  %v305 = vmul.f32 %v289, %v289
  %v306 = vsub.f32 %v304, %v305
  %v307 = vmax.f32 %v306, 0.0
  %v308 = vadd.f32 %v307, 1e-05
  %v309 = vrsqrt.pop %v308
  %v310 = vmul.f32 %v309, %v308
  %v311 = vmul.f32 %v310, %v309
  %v312 = vmul.f32 0.5, %v311
  %v313 = vsub.f32 1.5, %v312
  %v314 = vmul.f32 %v309, %v313
  %vm315 = vweird.f32 %v308
  %vm316 = vweird.f32 %v309
  %vm317 = vmor %vm315, %vm316
  %v318 = vsel %vm317, %v309, %v314
  %v319 = vsub.f32 %v267, %v289
  %v320 = vsub.f32 %v268, %v289
  %v321 = vsub.f32 %v269, %v289
  %v322 = vmul.f32 %v319, %v318
  %v323 = vmul.f32 %v320, %v318
  %v324 = vmul.f32 %v321, %v318
  %v325 = vperm.slane %v49, 1
  %v326 = vmul.f32 %v322, %v325
  %v327 = vmul.f32 %v323, %v325
  %v328 = vmul.f32 %v324, %v325
  %v329 = vperm.slane %v49, 2
  %v330 = vadd.f32 %v326, %v329
  %v331 = vadd.f32 %v327, %v329
  %v332 = vadd.f32 %v328, %v329
  %v333 = vpack.c.bf16 %v331, %v330
  %v334 = vpack.c.bf16 %v332, %v332
  %v335 = vperm.slane %v49, 3
  %v337 = vsel %vm270, %v333, 0
  %v340 = vsel %vm270, %v334, 0
  %342 = vmatpush.bf16.msra.mxu0 0
  %343 = vmatpush.bf16.msra.mxu0 0
  %344 = vmatpush.bf16.msra.mxu0 0
  %345 = vmatpush.bf16.msra.mxu0 0
  %346 = vmatpush.bf16.msra.mxu0 0
  %347 = vmatpush.bf16.msra.mxu0 0
  %348 = vmatpush.bf16.msra.mxu0 %v54
  %349 = vmatpush.bf16.msra.mxu0 %v53
  %350 = vmatmul.bf16.gmra.mxu0 %v337
  %v351 = vpop.f32.mrf.mxu0
  %v352 = vadd.f32 %v335, %v351
  %v353 = vpop.f32.mrf.mxu0
  %v354 = vadd.f32 %v335, %v353
  %355 = vmatmul.bf16.gmra.mxu0 %v340
  %v356 = vpop.f32.mrf.mxu0
  %v357 = vadd.f32 %v335, %v356
  %v358 = vpop.f32.mrf.mxu0
  %359 = vdwg.mxu0
  %vm360 = vcmp.ge.f32.partialorder %v352, 0.0
  %vm361 = vcmp.ge.f32.partialorder %v354, 0.0
  %vm362 = vcmp.ge.f32.partialorder %v357, 0.0
  %v363 = vmul.f32 %v352, 0.01
  %v364 = vmul.f32 %v354, 0.01
  %v365 = vmul.f32 %v357, 0.01
  %v366 = vsel %vm360, %v352, %v363
  %v367 = vsel %vm361, %v354, %v364
  %v368 = vsel %vm362, %v357, %v365
  %v369 = vsel %vm270, %v366, 0.0
  %v370 = vsel %vm270, %v367, 0.0
  %v371 = vadd.f32 %v369, %v370
  %v372 = vsel %vm270, %v368, 0.0
  %v373 = vadd.f32 %v371, %v372
  %v374 = vrot.slane %v373, 4
  %v375 = vadd.f32 %v373, %v374
  %v376 = vrot.slane %v375, 2
  %v377 = vadd.f32 %v375, %v376
  %v378 = vrot.slane %v377, 1
  %v379 = vadd.f32 %v377, %v378
  %v380 = vmul.f32 %v379, %v288
  %v381 = vmul.f32 %v366, %v366
  %v382 = vmul.f32 %v367, %v367
  %v383 = vmul.f32 %v368, %v368
  %v384 = vsel %vm270, %v381, 0.0
  %v385 = vsel %vm270, %v382, 0.0
  %v386 = vadd.f32 %v384, %v385
  %v387 = vsel %vm270, %v383, 0.0
  %v388 = vadd.f32 %v386, %v387
  %v389 = vrot.slane %v388, 4
  %v390 = vadd.f32 %v388, %v389
  %v391 = vrot.slane %v390, 2
  %v392 = vadd.f32 %v390, %v391
  %v393 = vrot.slane %v392, 1
  %v394 = vadd.f32 %v392, %v393
  %v395 = vmul.f32 %v394, %v288
  %v396 = vmul.f32 %v380, %v380
  %v397 = vsub.f32 %v395, %v396
  %v398 = vmax.f32 %v397, 0.0
  %v399 = vadd.f32 %v398, 1e-05
  %v400 = vrsqrt.pop %v399
  %v401 = vmul.f32 %v400, %v399
  %v402 = vmul.f32 %v401, %v400
  %v403 = vmul.f32 0.5, %v402
  %v404 = vsub.f32 1.5, %v403
  %v405 = vmul.f32 %v400, %v404
  %vm406 = vweird.f32 %v399
  %vm407 = vweird.f32 %v400
  %vm408 = vmor %vm406, %vm407
  %v409 = vsel %vm408, %v400, %v405
  %v410 = vsub.f32 %v366, %v380
  %v411 = vsub.f32 %v367, %v380
  %v412 = vsub.f32 %v368, %v380
  %v413 = vmul.f32 %v410, %v409
  %v414 = vmul.f32 %v411, %v409
  %v415 = vmul.f32 %v412, %v409
  %v416 = vperm.slane %v49, 4
  %v417 = vmul.f32 %v413, %v416
  %v418 = vmul.f32 %v414, %v416
  %v419 = vmul.f32 %v415, %v416
  %v420 = vperm.slane %v49, 5
  %v421 = vadd.f32 %v417, %v420
  %v422 = vadd.f32 %v418, %v420
  %v423 = vadd.f32 %v419, %v420
  %v424 = vpack.c.bf16 %v422, %v421
  %v425 = vpack.c.bf16 %v423, %v423
  %v426 = vperm.slane %v51, 0
  %v428 = vsel %vm270, %v424, 0
  %v431 = vsel %vm270, %v425, 0
  %433 = vmatpush.bf16.msra.mxu0 0
  %434 = vmatpush.bf16.msra.mxu0 0
  %435 = vmatpush.bf16.msra.mxu0 0
  %436 = vmatpush.bf16.msra.mxu0 0
  %437 = vmatpush.bf16.msra.mxu0 0
  %438 = vmatpush.bf16.msra.mxu0 0
  %439 = vmatpush.bf16.msra.mxu0 %v56
  %440 = vmatpush.bf16.msra.mxu0 %v55
  %441 = vmatmul.bf16.gmra.mxu0 %v428
  %v442 = vpop.f32.mrf.mxu0
  %v443 = vadd.f32 %v426, %v442
  %v444 = vpop.f32.mrf.mxu0
  %v445 = vadd.f32 %v426, %v444
  %446 = vmatmul.bf16.gmra.mxu0 %v431
  %v447 = vpop.f32.mrf.mxu0
  %v448 = vadd.f32 %v426, %v447
  %v449 = vpop.f32.mrf.mxu0
  %450 = vdwg.mxu0
  %v451 = vpack.c.bf16 %v185, %v182
  %v452 = vpack.c.bf16 %v188, %v188
  %v454 = vsel %vm232, %v451, 0
  %v457 = vsel %vm232, %v452, 0
  %459 = vmatpush.bf16.msra.mxu0 0
  %460 = vmatpush.bf16.msra.mxu0 0
  %461 = vmatpush.bf16.msra.mxu0 0
  %462 = vmatpush.bf16.msra.mxu0 0
  %463 = vmatpush.bf16.msra.mxu0 0
  %464 = vmatpush.bf16.msra.mxu0 0
  %465 = vmatpush.bf16.msra.mxu0 0
  %466 = vmatpush.bf16.msra.mxu0 %v241
  %467 = vmatmul.bf16.gmra.mxu0 %v454
  %v468 = vpop.f32.mrf.mxu0
  %v469 = vadd.f32 %v231, %v468
  %v470 = vpop.f32.mrf.mxu0
  %v471 = vadd.f32 %v231, %v470
  %472 = vmatmul.bf16.gmra.mxu0 %v457
  %v473 = vpop.f32.mrf.mxu0
  %v474 = vadd.f32 %v231, %v473
  %v475 = vpop.f32.mrf.mxu0
  %476 = vdwg.mxu0
  %vm477 = vcmp.ge.f32.partialorder %v469, 0.0
  %vm478 = vcmp.ge.f32.partialorder %v471, 0.0
  %vm479 = vcmp.ge.f32.partialorder %v474, 0.0
  %v480 = vmul.f32 %v469, 0.01
  %v481 = vmul.f32 %v471, 0.01
  %v482 = vmul.f32 %v474, 0.01
  %v483 = vsel %vm477, %v469, %v480
  %v484 = vsel %vm478, %v471, %v481
  %v485 = vsel %vm479, %v474, %v482
  %v486 = vsel %vm270, %v483, 0.0
  %v487 = vsel %vm270, %v484, 0.0
  %v488 = vadd.f32 %v486, %v487
  %v489 = vsel %vm270, %v485, 0.0
  %v490 = vadd.f32 %v488, %v489
  %v491 = vrot.slane %v490, 4
  %v492 = vadd.f32 %v490, %v491
  %v493 = vrot.slane %v492, 2
  %v494 = vadd.f32 %v492, %v493
  %v495 = vrot.slane %v494, 1
  %v496 = vadd.f32 %v494, %v495
  %v497 = vmul.f32 %v496, %v288
  %v498 = vmul.f32 %v483, %v483
  %v499 = vmul.f32 %v484, %v484
  %v500 = vmul.f32 %v485, %v485
  %v501 = vsel %vm270, %v498, 0.0
  %v502 = vsel %vm270, %v499, 0.0
  %v503 = vadd.f32 %v501, %v502
  %v504 = vsel %vm270, %v500, 0.0
  %v505 = vadd.f32 %v503, %v504
  %v506 = vrot.slane %v505, 4
  %v507 = vadd.f32 %v505, %v506
  %v508 = vrot.slane %v507, 2
  %v509 = vadd.f32 %v507, %v508
  %v510 = vrot.slane %v509, 1
  %v511 = vadd.f32 %v509, %v510
  %v512 = vmul.f32 %v511, %v288
  %v513 = vmul.f32 %v497, %v497
  %v514 = vsub.f32 %v512, %v513
  %v515 = vmax.f32 %v514, 0.0
  %v516 = vadd.f32 %v515, 1e-05
  %v517 = vrsqrt.pop %v516
  %v518 = vmul.f32 %v517, %v516
  %v519 = vmul.f32 %v518, %v517
  %v520 = vmul.f32 0.5, %v519
  %v521 = vsub.f32 1.5, %v520
  %v522 = vmul.f32 %v517, %v521
  %vm523 = vweird.f32 %v516
  %vm524 = vweird.f32 %v517
  %vm525 = vmor %vm523, %vm524
  %v526 = vsel %vm525, %v517, %v522
  %v527 = vsub.f32 %v483, %v497
  %v528 = vsub.f32 %v484, %v497
  %v529 = vsub.f32 %v485, %v497
  %v530 = vmul.f32 %v527, %v526
  %v531 = vmul.f32 %v528, %v526
  %v532 = vmul.f32 %v529, %v526
  %v533 = vmul.f32 %v530, %v325
  %v534 = vmul.f32 %v531, %v325
  %v535 = vmul.f32 %v532, %v325
  %v536 = vadd.f32 %v533, %v329
  %v537 = vadd.f32 %v534, %v329
  %v538 = vadd.f32 %v535, %v329
  %v539 = vpack.c.bf16 %v537, %v536
  %v540 = vpack.c.bf16 %v538, %v538
  %v542 = vsel %vm270, %v539, 0
  %v545 = vsel %vm270, %v540, 0
  %547 = vmatpush.bf16.msra.mxu0 0
  %548 = vmatpush.bf16.msra.mxu0 0
  %549 = vmatpush.bf16.msra.mxu0 0
  %550 = vmatpush.bf16.msra.mxu0 0
  %551 = vmatpush.bf16.msra.mxu0 0
  %552 = vmatpush.bf16.msra.mxu0 0
  %553 = vmatpush.bf16.msra.mxu0 %v54
  %554 = vmatpush.bf16.msra.mxu0 %v53
  %555 = vmatmul.bf16.gmra.mxu0 %v542
  %v556 = vpop.f32.mrf.mxu0
  %v557 = vadd.f32 %v335, %v556
  %v558 = vpop.f32.mrf.mxu0
  %v559 = vadd.f32 %v335, %v558
  %560 = vmatmul.bf16.gmra.mxu0 %v545
  %v561 = vpop.f32.mrf.mxu0
  %v562 = vadd.f32 %v335, %v561
  %v563 = vpop.f32.mrf.mxu0
  %564 = vdwg.mxu0
  %vm565 = vcmp.ge.f32.partialorder %v557, 0.0
  %vm566 = vcmp.ge.f32.partialorder %v559, 0.0
  %vm567 = vcmp.ge.f32.partialorder %v562, 0.0
  %v568 = vmul.f32 %v557, 0.01
  %v569 = vmul.f32 %v559, 0.01
  %v570 = vmul.f32 %v562, 0.01
  %v571 = vsel %vm565, %v557, %v568
  %v572 = vsel %vm566, %v559, %v569
  %v573 = vsel %vm567, %v562, %v570
  %v574 = vsel %vm270, %v571, 0.0
  %v575 = vsel %vm270, %v572, 0.0
  %v576 = vadd.f32 %v574, %v575
  %v577 = vsel %vm270, %v573, 0.0
  %v578 = vadd.f32 %v576, %v577
  %v579 = vrot.slane %v578, 4
  %v580 = vadd.f32 %v578, %v579
  %v581 = vrot.slane %v580, 2
  %v582 = vadd.f32 %v580, %v581
  %v583 = vrot.slane %v582, 1
  %v584 = vadd.f32 %v582, %v583
  %v585 = vmul.f32 %v584, %v288
  %v586 = vmul.f32 %v571, %v571
  %v587 = vmul.f32 %v572, %v572
  %v588 = vmul.f32 %v573, %v573
  %v589 = vsel %vm270, %v586, 0.0
  %v590 = vsel %vm270, %v587, 0.0
  %v591 = vadd.f32 %v589, %v590
  %v592 = vsel %vm270, %v588, 0.0
  %v593 = vadd.f32 %v591, %v592
  %v594 = vrot.slane %v593, 4
  %v595 = vadd.f32 %v593, %v594
  %v596 = vrot.slane %v595, 2
  %v597 = vadd.f32 %v595, %v596
  %v598 = vrot.slane %v597, 1
  %v599 = vadd.f32 %v597, %v598
  %v600 = vmul.f32 %v599, %v288
  %v601 = vmul.f32 %v585, %v585
  %v602 = vsub.f32 %v600, %v601
  %v603 = vmax.f32 %v602, 0.0
  %v604 = vadd.f32 %v603, 1e-05
  %v605 = vrsqrt.pop %v604
  %v606 = vmul.f32 %v605, %v604
  %v607 = vmul.f32 %v606, %v605
  %v608 = vmul.f32 0.5, %v607
  %v609 = vsub.f32 1.5, %v608
  %v610 = vmul.f32 %v605, %v609
  %vm611 = vweird.f32 %v604
  %vm612 = vweird.f32 %v605
  %vm613 = vmor %vm611, %vm612
  %v614 = vsel %vm613, %v605, %v610
  %v615 = vsub.f32 %v571, %v585
  %v616 = vsub.f32 %v572, %v585
  %v617 = vsub.f32 %v573, %v585
  %v618 = vmul.f32 %v615, %v614
  %v619 = vmul.f32 %v616, %v614
  %v620 = vmul.f32 %v617, %v614
  %v621 = vmul.f32 %v618, %v416
  %v622 = vmul.f32 %v619, %v416
  %v623 = vmul.f32 %v620, %v416
  %v624 = vadd.f32 %v621, %v420
  %v625 = vadd.f32 %v622, %v420
  %v626 = vadd.f32 %v623, %v420
  %v627 = vpack.c.bf16 %v625, %v624
  %v628 = vpack.c.bf16 %v626, %v626
  %v630 = vsel %vm270, %v627, 0
  %v633 = vsel %vm270, %v628, 0
  %635 = vmatpush.bf16.msra.mxu0 0
  %636 = vmatpush.bf16.msra.mxu0 0
  %637 = vmatpush.bf16.msra.mxu0 0
  %638 = vmatpush.bf16.msra.mxu0 0
  %639 = vmatpush.bf16.msra.mxu0 0
  %640 = vmatpush.bf16.msra.mxu0 0
  %641 = vmatpush.bf16.msra.mxu0 %v56
  %642 = vmatpush.bf16.msra.mxu0 %v55
  %643 = vmatmul.bf16.gmra.mxu0 %v630
  %v644 = vpop.f32.mrf.mxu0
  %v645 = vadd.f32 %v426, %v644
  %v646 = vpop.f32.mrf.mxu0
  %v647 = vadd.f32 %v426, %v646
  %648 = vmatmul.bf16.gmra.mxu0 %v633
  %v649 = vpop.f32.mrf.mxu0
  %v650 = vadd.f32 %v426, %v649
  %v651 = vpop.f32.mrf.mxu0
  %652 = vdwg.mxu0
  %v653 = vadd.f32 %v443, %v645
  %v654 = vadd.f32 %v445, %v647
  %v655 = vadd.f32 %v448, %v650
  %v656 = vpack.c.bf16 %v654, %v653
  %v657 = vpack.c.bf16 %v655, %v655
  %v658 = vpack.c.bf16 %v224, %v221
  %v659 = vpack.c.bf16 %v227, %v227
  %v661 = vsel %vm232, %v658, 0
  %v664 = vsel %vm232, %v659, 0
  %v667 = vsel %vm239, %v59, 0
  %669 = vmatpush.bf16.msra.mxu0 0
  %670 = vmatpush.bf16.msra.mxu0 0
  %671 = vmatpush.bf16.msra.mxu0 0
  %672 = vmatpush.bf16.msra.mxu0 0
  %673 = vmatpush.bf16.msra.mxu0 0
  %674 = vmatpush.bf16.msra.mxu0 0
  %675 = vmatpush.bf16.msra.mxu0 0
  %676 = vmatpush.bf16.msra.mxu0 %v667
  %677 = vmatmul.bf16.gmra.mxu0 %v661
  %v678 = vpop.f32.mrf.mxu0
  %v679 = vadd.f32 0.0, %v678
  %v680 = vpop.f32.mrf.mxu0
  %v681 = vadd.f32 0.0, %v680
  %682 = vmatmul.bf16.gmra.mxu0 %v664
  %v683 = vpop.f32.mrf.mxu0
  %v684 = vadd.f32 0.0, %v683
  %v685 = vpop.f32.mrf.mxu0
  %686 = vdwg.mxu0
  %v688 = vsel %vm232, %v656, 0
  %v691 = vsel %vm232, %v657, 0
  %v694 = vsel %vm239, %v57, 0
  %696 = vmatpush.bf16.msra.mxu0 0
  %697 = vmatpush.bf16.msra.mxu0 0
  %698 = vmatpush.bf16.msra.mxu0 0
  %699 = vmatpush.bf16.msra.mxu0 0
  %700 = vmatpush.bf16.msra.mxu0 0
  %701 = vmatpush.bf16.msra.mxu0 0
  %702 = vmatpush.bf16.msra.mxu0 0
  %703 = vmatpush.bf16.msra.mxu0 %v694
  %704 = vmatmul.bf16.gmra.mxu0 %v688
  %v705 = vpop.f32.mrf.mxu0
  %v706 = vadd.f32 %v679, %v705
  %v707 = vpop.f32.mrf.mxu0
  %v708 = vadd.f32 %v681, %v707
  %709 = vmatmul.bf16.gmra.mxu0 %v691
  %v710 = vpop.f32.mrf.mxu0
  %v711 = vadd.f32 %v684, %v710
  %v712 = vpop.f32.mrf.mxu0
  %713 = vdwg.mxu0
  %v714 = vperm.slane %v49, 6
  %v715 = vadd.f32 %v706, %v714
  %v716 = vadd.f32 %v708, %v714
  %v717 = vadd.f32 %v711, %v714
  %v718 = vperm.slane %v49, 7
  %v719 = vperm.slane %v50, 0
  %v720 = vperm.slane %v50, 1
  %v721 = vperm.slane %v50, 2
  %v722 = vperm.slane %v50, 3
  %v723 = vperm.slane %v51, 1
  %v724 = vld [vmem:[%s3] sm:$0xff]
  %v725 = vld [vmem:[%s3 + $0x8] sm:$0xff]
  %v726 = vld [vmem:[%s3 + $0x10] sm:$0xff]
  %v727 = vpack.c.bf16 %v725, %v724
  %v728 = vpack.c.bf16 %v726, %v726
  %v730 = vsel %vm232, %v727, 0
  %v733 = vsel %vm232, %v728, 0
  %v736 = vsel %vm239, %v58, 0
  %738 = vmatpush.bf16.msra.mxu0 0
  %739 = vmatpush.bf16.msra.mxu0 0
  %740 = vmatpush.bf16.msra.mxu0 0
  %741 = vmatpush.bf16.msra.mxu0 0
  %742 = vmatpush.bf16.msra.mxu0 0
  %743 = vmatpush.bf16.msra.mxu0 0
  %744 = vmatpush.bf16.msra.mxu0 0
  %745 = vmatpush.bf16.msra.mxu0 %v736
  %746 = vmatmul.bf16.gmra.mxu0 %v730
  %v747 = vpop.f32.mrf.mxu0
  %v748 = vadd.f32 0.0, %v747
  %v749 = vpop.f32.mrf.mxu0
  %v750 = vadd.f32 0.0, %v749
  %751 = vmatmul.bf16.gmra.mxu0 %v733
  %v752 = vpop.f32.mrf.mxu0
  %v753 = vadd.f32 0.0, %v752
  %v754 = vpop.f32.mrf.mxu0
  %755 = vdwg.mxu0
  %v756 = vadd.f32 %v715, %v748
  %v757 = vadd.f32 %v716, %v750
  %v758 = vadd.f32 %v717, %v753
  %vm759 = vcmp.ge.f32.partialorder %v756, 0.0
  %vm760 = vcmp.ge.f32.partialorder %v757, 0.0
  %vm761 = vcmp.ge.f32.partialorder %v758, 0.0
  %v762 = vmul.f32 %v756, 0.01
  %v763 = vmul.f32 %v757, 0.01
  %v764 = vmul.f32 %v758, 0.01
  %v765 = vsel %vm759, %v756, %v762
  %v766 = vsel %vm760, %v757, %v763
  %v767 = vsel %vm761, %v758, %v764
  %v768 = vsel %vm270, %v765, 0.0
  %v769 = vsel %vm270, %v766, 0.0
  %v770 = vadd.f32 %v768, %v769
  %v771 = vsel %vm270, %v767, 0.0
  %v772 = vadd.f32 %v770, %v771
  %v773 = vrot.slane %v772, 4
  %v774 = vadd.f32 %v772, %v773
  %v775 = vrot.slane %v774, 2
  %v776 = vadd.f32 %v774, %v775
  %v777 = vrot.slane %v776, 1
  %v778 = vadd.f32 %v776, %v777
  %v779 = vmul.f32 %v778, %v288
  %v780 = vmul.f32 %v765, %v765
  %v781 = vmul.f32 %v766, %v766
  %v782 = vmul.f32 %v767, %v767
  %v783 = vsel %vm270, %v780, 0.0
  %v784 = vsel %vm270, %v781, 0.0
  %v785 = vadd.f32 %v783, %v784
  %v786 = vsel %vm270, %v782, 0.0
  %v787 = vadd.f32 %v785, %v786
  %v788 = vrot.slane %v787, 4
  %v789 = vadd.f32 %v787, %v788
  %v790 = vrot.slane %v789, 2
  %v791 = vadd.f32 %v789, %v790
  %v792 = vrot.slane %v791, 1
  %v793 = vadd.f32 %v791, %v792
  %v794 = vmul.f32 %v793, %v288
  %v795 = vmul.f32 %v779, %v779
  %v796 = vsub.f32 %v794, %v795
  %v797 = vmax.f32 %v796, 0.0
  %v798 = vadd.f32 %v797, 1e-05
  %v799 = vrsqrt.pop %v798
  %v800 = vmul.f32 %v799, %v798
  %v801 = vmul.f32 %v800, %v799
  %v802 = vmul.f32 0.5, %v801
  %v803 = vsub.f32 1.5, %v802
  %v804 = vmul.f32 %v799, %v803
  %vm805 = vweird.f32 %v798
  %vm806 = vweird.f32 %v799
  %vm807 = vmor %vm805, %vm806
  %v808 = vsel %vm807, %v799, %v804
  %v809 = vsub.f32 %v765, %v779
  %v810 = vsub.f32 %v766, %v779
  %v811 = vsub.f32 %v767, %v779
  %v812 = vmul.f32 %v809, %v808
  %v813 = vmul.f32 %v810, %v808
  %v814 = vmul.f32 %v811, %v808
  %v815 = vmul.f32 %v812, %v718
  %v816 = vmul.f32 %v813, %v718
  %v817 = vmul.f32 %v814, %v718
  %v818 = vadd.f32 %v815, %v719
  %v819 = vadd.f32 %v816, %v719
  %v820 = vadd.f32 %v817, %v719
  %v821 = vpack.c.bf16 %v819, %v818
  %v822 = vpack.c.bf16 %v820, %v820
  %v824 = vsel %vm270, %v821, 0
  %v827 = vsel %vm270, %v822, 0
  %829 = vmatpush.bf16.msra.mxu0 0
  %830 = vmatpush.bf16.msra.mxu0 0
  %831 = vmatpush.bf16.msra.mxu0 0
  %832 = vmatpush.bf16.msra.mxu0 0
  %833 = vmatpush.bf16.msra.mxu0 0
  %834 = vmatpush.bf16.msra.mxu0 0
  %835 = vmatpush.bf16.msra.mxu0 %v61
  %836 = vmatpush.bf16.msra.mxu0 %v60
  %837 = vmatmul.bf16.gmra.mxu0 %v824
  %v838 = vpop.f32.mrf.mxu0
  %v839 = vadd.f32 %v720, %v838
  %v840 = vpop.f32.mrf.mxu0
  %v841 = vadd.f32 %v720, %v840
  %842 = vmatmul.bf16.gmra.mxu0 %v827
  %v843 = vpop.f32.mrf.mxu0
  %v844 = vadd.f32 %v720, %v843
  %v845 = vpop.f32.mrf.mxu0
  %846 = vdwg.mxu0
  %vm847 = vcmp.ge.f32.partialorder %v839, 0.0
  %vm848 = vcmp.ge.f32.partialorder %v841, 0.0
  %vm849 = vcmp.ge.f32.partialorder %v844, 0.0
  %v850 = vmul.f32 %v839, 0.01
  %v851 = vmul.f32 %v841, 0.01
  %v852 = vmul.f32 %v844, 0.01
  %v853 = vsel %vm847, %v839, %v850
  %v854 = vsel %vm848, %v841, %v851
  %v855 = vsel %vm849, %v844, %v852
  %v856 = vsel %vm270, %v853, 0.0
  %v857 = vsel %vm270, %v854, 0.0
  %v858 = vadd.f32 %v856, %v857
  %v859 = vsel %vm270, %v855, 0.0
  %v860 = vadd.f32 %v858, %v859
  %v861 = vrot.slane %v860, 4
  %v862 = vadd.f32 %v860, %v861
  %v863 = vrot.slane %v862, 2
  %v864 = vadd.f32 %v862, %v863
  %v865 = vrot.slane %v864, 1
  %v866 = vadd.f32 %v864, %v865
  %v867 = vmul.f32 %v866, %v288
  %v868 = vmul.f32 %v853, %v853
  %v869 = vmul.f32 %v854, %v854
  %v870 = vmul.f32 %v855, %v855
  %v871 = vsel %vm270, %v868, 0.0
  %v872 = vsel %vm270, %v869, 0.0
  %v873 = vadd.f32 %v871, %v872
  %v874 = vsel %vm270, %v870, 0.0
  %v875 = vadd.f32 %v873, %v874
  %v876 = vrot.slane %v875, 4
  %v877 = vadd.f32 %v875, %v876
  %v878 = vrot.slane %v877, 2
  %v879 = vadd.f32 %v877, %v878
  %v880 = vrot.slane %v879, 1
  %v881 = vadd.f32 %v879, %v880
  %v882 = vmul.f32 %v881, %v288
  %v883 = vmul.f32 %v867, %v867
  %v884 = vsub.f32 %v882, %v883
  %v885 = vmax.f32 %v884, 0.0
  %v886 = vadd.f32 %v885, 1e-05
  %v887 = vrsqrt.pop %v886
  %v888 = vmul.f32 %v887, %v886
  %v889 = vmul.f32 %v888, %v887
  %v890 = vmul.f32 0.5, %v889
  %v891 = vsub.f32 1.5, %v890
  %v892 = vmul.f32 %v887, %v891
  %vm893 = vweird.f32 %v886
  %vm894 = vweird.f32 %v887
  %vm895 = vmor %vm893, %vm894
  %v896 = vsel %vm895, %v887, %v892
  %v897 = vsub.f32 %v853, %v867
  %v898 = vsub.f32 %v854, %v867
  %v899 = vsub.f32 %v855, %v867
  %v900 = vmul.f32 %v897, %v896
  %v901 = vmul.f32 %v898, %v896
  %v902 = vmul.f32 %v899, %v896
  %v903 = vmul.f32 %v900, %v721
  %v904 = vmul.f32 %v901, %v721
  %v905 = vmul.f32 %v902, %v721
  %v906 = vadd.f32 %v903, %v722
  %v907 = vadd.f32 %v904, %v722
  %v908 = vadd.f32 %v905, %v722
  %v909 = vpack.c.bf16 %v907, %v906
  %v910 = vpack.c.bf16 %v908, %v908
  %913 = vrot.lane.b32.xlu0 %v55, 120
  %v914 = vpop.permute.xlu0 %913
  %915 = vrot.lane.b32.xlu0 %v56, 120
  %v916 = vpop.permute.xlu0 %915
  %v920 = vsel %vm270, %v909, 0
  %v923 = vsel %vm270, %v910, 0
  %925 = vmatpush.bf16.msra.mxu0 0
  %926 = vmatpush.bf16.msra.mxu0 0
  %927 = vmatpush.bf16.msra.mxu0 0
  %928 = vmatpush.bf16.msra.mxu0 0
  %929 = vmatpush.bf16.msra.mxu0 0
  %930 = vmatpush.bf16.msra.mxu0 0
  %931 = vmatpush.bf16.msra.mxu0 %v916
  %932 = vmatpush.bf16.msra.mxu0 %v914
  %933 = vmatmul.bf16.gmra.mxu0 %v920
  %v934 = vpop.f32.mrf.mxu0
  %v935 = vadd.f32 %v723, %v934
  %v936 = vpop.f32.mrf.mxu0
  %v937 = vadd.f32 %v723, %v936
  %938 = vmatmul.bf16.gmra.mxu0 %v923
  %v939 = vpop.f32.mrf.mxu0
  %v940 = vadd.f32 %v723, %v939
  %v941 = vpop.f32.mrf.mxu0
  %942 = vdwg.mxu0
  %v943 = vpack.c.bf16 %v937, %v935
  %v944 = vpack.c.bf16 %v940, %v940
  %v946 = vsel %vm232, %v943, 0
  %v949 = vsel %vm232, %v944, 0
  %951 = vmatpush.bf16.msra.mxu0 0
  %952 = vmatpush.bf16.msra.mxu0 0
  %953 = vmatpush.bf16.msra.mxu0 0
  %954 = vmatpush.bf16.msra.mxu0 0
  %955 = vmatpush.bf16.msra.mxu0 0
  %956 = vmatpush.bf16.msra.mxu0 0
  %957 = vmatpush.bf16.msra.mxu0 0
  %958 = vmatpush.bf16.msra.mxu0 %v736
  %959 = vmatmul.bf16.gmra.mxu0 %v946
  %v960 = vpop.f32.mrf.mxu0
  %v961 = vadd.f32 0.0, %v960
  %v962 = vpop.f32.mrf.mxu0
  %v963 = vadd.f32 0.0, %v962
  %964 = vmatmul.bf16.gmra.mxu0 %v949
  %v965 = vpop.f32.mrf.mxu0
  %v966 = vadd.f32 0.0, %v965
  %v967 = vpop.f32.mrf.mxu0
  %968 = vdwg.mxu0
  %v969 = vadd.f32 %v715, %v961
  %v970 = vadd.f32 %v716, %v963
  %v971 = vadd.f32 %v717, %v966
  %vm972 = vcmp.ge.f32.partialorder %v969, 0.0
  %vm973 = vcmp.ge.f32.partialorder %v970, 0.0
  %vm974 = vcmp.ge.f32.partialorder %v971, 0.0
  %v975 = vmul.f32 %v969, 0.01
  %v976 = vmul.f32 %v970, 0.01
  %v977 = vmul.f32 %v971, 0.01
  %v978 = vsel %vm972, %v969, %v975
  %v979 = vsel %vm973, %v970, %v976
  %v980 = vsel %vm974, %v971, %v977
  %v981 = vsel %vm270, %v978, 0.0
  %v982 = vsel %vm270, %v979, 0.0
  %v983 = vadd.f32 %v981, %v982
  %v984 = vsel %vm270, %v980, 0.0
  %v985 = vadd.f32 %v983, %v984
  %v986 = vrot.slane %v985, 4
  %v987 = vadd.f32 %v985, %v986
  %v988 = vrot.slane %v987, 2
  %v989 = vadd.f32 %v987, %v988
  %v990 = vrot.slane %v989, 1
  %v991 = vadd.f32 %v989, %v990
  %v992 = vmul.f32 %v991, %v288
  %v993 = vmul.f32 %v978, %v978
  %v994 = vmul.f32 %v979, %v979
  %v995 = vmul.f32 %v980, %v980
  %v996 = vsel %vm270, %v993, 0.0
  %v997 = vsel %vm270, %v994, 0.0
  %v998 = vadd.f32 %v996, %v997
  %v999 = vsel %vm270, %v995, 0.0
  %v1000 = vadd.f32 %v998, %v999
  %v1001 = vrot.slane %v1000, 4
  %v1002 = vadd.f32 %v1000, %v1001
  %v1003 = vrot.slane %v1002, 2
  %v1004 = vadd.f32 %v1002, %v1003
  %v1005 = vrot.slane %v1004, 1
  %v1006 = vadd.f32 %v1004, %v1005
  %v1007 = vmul.f32 %v1006, %v288
  %v1008 = vmul.f32 %v992, %v992
  %v1009 = vsub.f32 %v1007, %v1008
  %v1010 = vmax.f32 %v1009, 0.0
  %v1011 = vadd.f32 %v1010, 1e-05
  %v1012 = vrsqrt.pop %v1011
  %v1013 = vmul.f32 %v1012, %v1011
  %v1014 = vmul.f32 %v1013, %v1012
  %v1015 = vmul.f32 0.5, %v1014
  %v1016 = vsub.f32 1.5, %v1015
  %v1017 = vmul.f32 %v1012, %v1016
  %vm1018 = vweird.f32 %v1011
  %vm1019 = vweird.f32 %v1012
  %vm1020 = vmor %vm1018, %vm1019
  %v1021 = vsel %vm1020, %v1012, %v1017
  %v1022 = vsub.f32 %v978, %v992
  %v1023 = vsub.f32 %v979, %v992
  %v1024 = vsub.f32 %v980, %v992
  %v1025 = vmul.f32 %v1022, %v1021
  %v1026 = vmul.f32 %v1023, %v1021
  %v1027 = vmul.f32 %v1024, %v1021
  %v1028 = vmul.f32 %v1025, %v718
  %v1029 = vmul.f32 %v1026, %v718
  %v1030 = vmul.f32 %v1027, %v718
  %v1031 = vadd.f32 %v1028, %v719
  %v1032 = vadd.f32 %v1029, %v719
  %v1033 = vadd.f32 %v1030, %v719
  %v1034 = vpack.c.bf16 %v1032, %v1031
  %v1035 = vpack.c.bf16 %v1033, %v1033
  %v1037 = vsel %vm270, %v1034, 0
  %v1040 = vsel %vm270, %v1035, 0
  %1042 = vmatpush.bf16.msra.mxu0 0
  %1043 = vmatpush.bf16.msra.mxu0 0
  %1044 = vmatpush.bf16.msra.mxu0 0
  %1045 = vmatpush.bf16.msra.mxu0 0
  %1046 = vmatpush.bf16.msra.mxu0 0
  %1047 = vmatpush.bf16.msra.mxu0 0
  %1048 = vmatpush.bf16.msra.mxu0 %v61
  %1049 = vmatpush.bf16.msra.mxu0 %v60
  %1050 = vmatmul.bf16.gmra.mxu0 %v1037
  %v1051 = vpop.f32.mrf.mxu0
  %v1052 = vadd.f32 %v720, %v1051
  %v1053 = vpop.f32.mrf.mxu0
  %v1054 = vadd.f32 %v720, %v1053
  %1055 = vmatmul.bf16.gmra.mxu0 %v1040
  %v1056 = vpop.f32.mrf.mxu0
  %v1057 = vadd.f32 %v720, %v1056
  %v1058 = vpop.f32.mrf.mxu0
  %1059 = vdwg.mxu0
  %vm1060 = vcmp.ge.f32.partialorder %v1052, 0.0
  %vm1061 = vcmp.ge.f32.partialorder %v1054, 0.0
  %vm1062 = vcmp.ge.f32.partialorder %v1057, 0.0
  %v1063 = vmul.f32 %v1052, 0.01
  %v1064 = vmul.f32 %v1054, 0.01
  %v1065 = vmul.f32 %v1057, 0.01
  %v1066 = vsel %vm1060, %v1052, %v1063
  %v1067 = vsel %vm1061, %v1054, %v1064
  %v1068 = vsel %vm1062, %v1057, %v1065
  %v1069 = vsel %vm270, %v1066, 0.0
  %v1070 = vsel %vm270, %v1067, 0.0
  %v1071 = vadd.f32 %v1069, %v1070
  %v1072 = vsel %vm270, %v1068, 0.0
  %v1073 = vadd.f32 %v1071, %v1072
  %v1074 = vrot.slane %v1073, 4
  %v1075 = vadd.f32 %v1073, %v1074
  %v1076 = vrot.slane %v1075, 2
  %v1077 = vadd.f32 %v1075, %v1076
  %v1078 = vrot.slane %v1077, 1
  %v1079 = vadd.f32 %v1077, %v1078
  %v1080 = vmul.f32 %v1079, %v288
  %v1081 = vmul.f32 %v1066, %v1066
  %v1082 = vmul.f32 %v1067, %v1067
  %v1083 = vmul.f32 %v1068, %v1068
  %v1084 = vsel %vm270, %v1081, 0.0
  %v1085 = vsel %vm270, %v1082, 0.0
  %v1086 = vadd.f32 %v1084, %v1085
  %v1087 = vsel %vm270, %v1083, 0.0
  %v1088 = vadd.f32 %v1086, %v1087
  %v1089 = vrot.slane %v1088, 4
  %v1090 = vadd.f32 %v1088, %v1089
  %v1091 = vrot.slane %v1090, 2
  %v1092 = vadd.f32 %v1090, %v1091
  %v1093 = vrot.slane %v1092, 1
  %v1094 = vadd.f32 %v1092, %v1093
  %v1095 = vmul.f32 %v1094, %v288
  %v1096 = vmul.f32 %v1080, %v1080
  %v1097 = vsub.f32 %v1095, %v1096
  %v1098 = vmax.f32 %v1097, 0.0
  %v1099 = vadd.f32 %v1098, 1e-05
  %v1100 = vrsqrt.pop %v1099
  %v1101 = vmul.f32 %v1100, %v1099
  %v1102 = vmul.f32 %v1101, %v1100
  %v1103 = vmul.f32 0.5, %v1102
  %v1104 = vsub.f32 1.5, %v1103
  %v1105 = vmul.f32 %v1100, %v1104
  %vm1106 = vweird.f32 %v1099
  %vm1107 = vweird.f32 %v1100
  %vm1108 = vmor %vm1106, %vm1107
  %v1109 = vsel %vm1108, %v1100, %v1105
  %v1110 = vsub.f32 %v1066, %v1080
  %v1111 = vsub.f32 %v1067, %v1080
  %v1112 = vsub.f32 %v1068, %v1080
  %v1113 = vmul.f32 %v1110, %v1109
  %v1114 = vmul.f32 %v1111, %v1109
  %v1115 = vmul.f32 %v1112, %v1109
  %v1116 = vmul.f32 %v1113, %v721
  %v1117 = vmul.f32 %v1114, %v721
  %v1118 = vmul.f32 %v1115, %v721
  %v1119 = vadd.f32 %v1116, %v722
  %v1120 = vadd.f32 %v1117, %v722
  %v1121 = vadd.f32 %v1118, %v722
  %v1122 = vpack.c.bf16 %v1120, %v1119
  %v1123 = vpack.c.bf16 %v1121, %v1121
  %v1125 = vsel %vm270, %v1122, 0
  %v1128 = vsel %vm270, %v1123, 0
  %1130 = vmatpush.bf16.msra.mxu0 0
  %1131 = vmatpush.bf16.msra.mxu0 0
  %1132 = vmatpush.bf16.msra.mxu0 0
  %1133 = vmatpush.bf16.msra.mxu0 0
  %1134 = vmatpush.bf16.msra.mxu0 0
  %1135 = vmatpush.bf16.msra.mxu0 0
  %1136 = vmatpush.bf16.msra.mxu0 %v916
  %1137 = vmatpush.bf16.msra.mxu0 %v914
  %1138 = vmatmul.bf16.gmra.mxu0 %v1125
  %v1139 = vpop.f32.mrf.mxu0
  %v1140 = vadd.f32 %v723, %v1139
  %v1141 = vpop.f32.mrf.mxu0
  %v1142 = vadd.f32 %v723, %v1141
  %1143 = vmatmul.bf16.gmra.mxu0 %v1128
  %v1144 = vpop.f32.mrf.mxu0
  %v1145 = vadd.f32 %v723, %v1144
  %v1146 = vpop.f32.mrf.mxu0
  %1147 = vdwg.mxu0
  %v1148 = vpack.c.bf16 %v1142, %v1140
  %v1149 = vpack.c.bf16 %v1145, %v1145
  %v1151 = vsel %vm232, %v1148, 0
  %v1154 = vsel %vm232, %v1149, 0
  %1156 = vmatpush.bf16.msra.mxu0 0
  %1157 = vmatpush.bf16.msra.mxu0 0
  %1158 = vmatpush.bf16.msra.mxu0 0
  %1159 = vmatpush.bf16.msra.mxu0 0
  %1160 = vmatpush.bf16.msra.mxu0 0
  %1161 = vmatpush.bf16.msra.mxu0 0
  %1162 = vmatpush.bf16.msra.mxu0 0
  %1163 = vmatpush.bf16.msra.mxu0 %v736
  %1164 = vmatmul.bf16.gmra.mxu0 %v1151
  %v1165 = vpop.f32.mrf.mxu0
  %v1166 = vadd.f32 0.0, %v1165
  %v1167 = vpop.f32.mrf.mxu0
  %v1168 = vadd.f32 0.0, %v1167
  %1169 = vmatmul.bf16.gmra.mxu0 %v1154
  %v1170 = vpop.f32.mrf.mxu0
  %v1171 = vadd.f32 0.0, %v1170
  %v1172 = vpop.f32.mrf.mxu0
  %1173 = vdwg.mxu0
  %v1174 = vadd.f32 %v715, %v1166
  %v1175 = vadd.f32 %v716, %v1168
  %v1176 = vadd.f32 %v717, %v1171
  %vm1177 = vcmp.ge.f32.partialorder %v1174, 0.0
  %vm1178 = vcmp.ge.f32.partialorder %v1175, 0.0
  %vm1179 = vcmp.ge.f32.partialorder %v1176, 0.0
  %v1180 = vmul.f32 %v1174, 0.01
  %v1181 = vmul.f32 %v1175, 0.01
  %v1182 = vmul.f32 %v1176, 0.01
  %v1183 = vsel %vm1177, %v1174, %v1180
  %v1184 = vsel %vm1178, %v1175, %v1181
  %v1185 = vsel %vm1179, %v1176, %v1182
  %v1186 = vsel %vm270, %v1183, 0.0
  %v1187 = vsel %vm270, %v1184, 0.0
  %v1188 = vadd.f32 %v1186, %v1187
  %v1189 = vsel %vm270, %v1185, 0.0
  %v1190 = vadd.f32 %v1188, %v1189
  %v1191 = vrot.slane %v1190, 4
  %v1192 = vadd.f32 %v1190, %v1191
  %v1193 = vrot.slane %v1192, 2
  %v1194 = vadd.f32 %v1192, %v1193
  %v1195 = vrot.slane %v1194, 1
  %v1196 = vadd.f32 %v1194, %v1195
  %v1197 = vmul.f32 %v1196, %v288
  %v1198 = vmul.f32 %v1183, %v1183
  %v1199 = vmul.f32 %v1184, %v1184
  %v1200 = vmul.f32 %v1185, %v1185
  %v1201 = vsel %vm270, %v1198, 0.0
  %v1202 = vsel %vm270, %v1199, 0.0
  %v1203 = vadd.f32 %v1201, %v1202
  %v1204 = vsel %vm270, %v1200, 0.0
  %v1205 = vadd.f32 %v1203, %v1204
  %v1206 = vrot.slane %v1205, 4
  %v1207 = vadd.f32 %v1205, %v1206
  %v1208 = vrot.slane %v1207, 2
  %v1209 = vadd.f32 %v1207, %v1208
  %v1210 = vrot.slane %v1209, 1
  %v1211 = vadd.f32 %v1209, %v1210
  %v1212 = vmul.f32 %v1211, %v288
  %v1213 = vmul.f32 %v1197, %v1197
  %v1214 = vsub.f32 %v1212, %v1213
  %v1215 = vmax.f32 %v1214, 0.0
  %v1216 = vadd.f32 %v1215, 1e-05
  %v1217 = vrsqrt.pop %v1216
  %v1218 = vmul.f32 %v1217, %v1216
  %v1219 = vmul.f32 %v1218, %v1217
  %v1220 = vmul.f32 0.5, %v1219
  %v1221 = vsub.f32 1.5, %v1220
  %v1222 = vmul.f32 %v1217, %v1221
  %vm1223 = vweird.f32 %v1216
  %vm1224 = vweird.f32 %v1217
  %vm1225 = vmor %vm1223, %vm1224
  %v1226 = vsel %vm1225, %v1217, %v1222
  %v1227 = vsub.f32 %v1183, %v1197
  %v1228 = vsub.f32 %v1184, %v1197
  %v1229 = vsub.f32 %v1185, %v1197
  %v1230 = vmul.f32 %v1227, %v1226
  %v1231 = vmul.f32 %v1228, %v1226
  %v1232 = vmul.f32 %v1229, %v1226
  %v1233 = vmul.f32 %v1230, %v718
  %v1234 = vmul.f32 %v1231, %v718
  %v1235 = vmul.f32 %v1232, %v718
  %v1236 = vadd.f32 %v1233, %v719
  %v1237 = vadd.f32 %v1234, %v719
  %v1238 = vadd.f32 %v1235, %v719
  %v1239 = vpack.c.bf16 %v1237, %v1236
  %v1240 = vpack.c.bf16 %v1238, %v1238
  %v1242 = vsel %vm270, %v1239, 0
  %v1245 = vsel %vm270, %v1240, 0
  %1247 = vmatpush.bf16.msra.mxu0 0
  %1248 = vmatpush.bf16.msra.mxu0 0
  %1249 = vmatpush.bf16.msra.mxu0 0
  %1250 = vmatpush.bf16.msra.mxu0 0
  %1251 = vmatpush.bf16.msra.mxu0 0
  %1252 = vmatpush.bf16.msra.mxu0 0
  %1253 = vmatpush.bf16.msra.mxu0 %v61
  %1254 = vmatpush.bf16.msra.mxu0 %v60
  %1255 = vmatmul.bf16.gmra.mxu0 %v1242
  %v1256 = vpop.f32.mrf.mxu0
  %v1257 = vadd.f32 %v720, %v1256
  %v1258 = vpop.f32.mrf.mxu0
  %v1259 = vadd.f32 %v720, %v1258
  %1260 = vmatmul.bf16.gmra.mxu0 %v1245
  %v1261 = vpop.f32.mrf.mxu0
  %v1262 = vadd.f32 %v720, %v1261
  %v1263 = vpop.f32.mrf.mxu0
  %1264 = vdwg.mxu0
  %vm1265 = vcmp.ge.f32.partialorder %v1257, 0.0
  %vm1266 = vcmp.ge.f32.partialorder %v1259, 0.0
  %vm1267 = vcmp.ge.f32.partialorder %v1262, 0.0
  %v1268 = vmul.f32 %v1257, 0.01
  %v1269 = vmul.f32 %v1259, 0.01
  %v1270 = vmul.f32 %v1262, 0.01
  %v1271 = vsel %vm1265, %v1257, %v1268
  %v1272 = vsel %vm1266, %v1259, %v1269
  %v1273 = vsel %vm1267, %v1262, %v1270
  %v1274 = vsel %vm270, %v1271, 0.0
  %v1275 = vsel %vm270, %v1272, 0.0
  %v1276 = vadd.f32 %v1274, %v1275
  %v1277 = vsel %vm270, %v1273, 0.0
  %v1278 = vadd.f32 %v1276, %v1277
  %v1279 = vrot.slane %v1278, 4
  %v1280 = vadd.f32 %v1278, %v1279
  %v1281 = vrot.slane %v1280, 2
  %v1282 = vadd.f32 %v1280, %v1281
  %v1283 = vrot.slane %v1282, 1
  %v1284 = vadd.f32 %v1282, %v1283
  %v1285 = vmul.f32 %v1284, %v288
  %v1286 = vmul.f32 %v1271, %v1271
  %v1287 = vmul.f32 %v1272, %v1272
  %v1288 = vmul.f32 %v1273, %v1273
  %v1289 = vsel %vm270, %v1286, 0.0
  %v1290 = vsel %vm270, %v1287, 0.0
  %v1291 = vadd.f32 %v1289, %v1290
  %v1292 = vsel %vm270, %v1288, 0.0
  %v1293 = vadd.f32 %v1291, %v1292
  %v1294 = vrot.slane %v1293, 4
  %v1295 = vadd.f32 %v1293, %v1294
  %v1296 = vrot.slane %v1295, 2
  %v1297 = vadd.f32 %v1295, %v1296
  %v1298 = vrot.slane %v1297, 1
  %v1299 = vadd.f32 %v1297, %v1298
  %v1300 = vmul.f32 %v1299, %v288
  %v1301 = vmul.f32 %v1285, %v1285
  %v1302 = vsub.f32 %v1300, %v1301
  %v1303 = vmax.f32 %v1302, 0.0
  %v1304 = vadd.f32 %v1303, 1e-05
  %v1305 = vrsqrt.pop %v1304
  %v1306 = vmul.f32 %v1305, %v1304
  %v1307 = vmul.f32 %v1306, %v1305
  %v1308 = vmul.f32 0.5, %v1307
  %v1309 = vsub.f32 1.5, %v1308
  %v1310 = vmul.f32 %v1305, %v1309
  %vm1311 = vweird.f32 %v1304
  %vm1312 = vweird.f32 %v1305
  %vm1313 = vmor %vm1311, %vm1312
  %v1314 = vsel %vm1313, %v1305, %v1310
  %v1315 = vsub.f32 %v1271, %v1285
  %v1316 = vsub.f32 %v1272, %v1285
  %v1317 = vsub.f32 %v1273, %v1285
  %v1318 = vmul.f32 %v1315, %v1314
  %v1319 = vmul.f32 %v1316, %v1314
  %v1320 = vmul.f32 %v1317, %v1314
  %v1321 = vmul.f32 %v1318, %v721
  %v1322 = vmul.f32 %v1319, %v721
  %v1323 = vmul.f32 %v1320, %v721
  %v1324 = vadd.f32 %v1321, %v722
  %v1325 = vadd.f32 %v1322, %v722
  %v1326 = vadd.f32 %v1323, %v722
  %v1327 = vpack.c.bf16 %v1325, %v1324
  %v1328 = vpack.c.bf16 %v1326, %v1326
  %v1330 = vsel %vm270, %v1327, 0
  %v1333 = vsel %vm270, %v1328, 0
  %1335 = vmatpush.bf16.msra.mxu0 0
  %1336 = vmatpush.bf16.msra.mxu0 0
  %1337 = vmatpush.bf16.msra.mxu0 0
  %1338 = vmatpush.bf16.msra.mxu0 0
  %1339 = vmatpush.bf16.msra.mxu0 0
  %1340 = vmatpush.bf16.msra.mxu0 0
  %1341 = vmatpush.bf16.msra.mxu0 %v916
  %1342 = vmatpush.bf16.msra.mxu0 %v914
  %1343 = vmatmul.bf16.gmra.mxu0 %v1330
  %v1344 = vpop.f32.mrf.mxu0
  %v1345 = vadd.f32 %v723, %v1344
  %v1346 = vpop.f32.mrf.mxu0
  %v1347 = vadd.f32 %v723, %v1346
  %1348 = vmatmul.bf16.gmra.mxu0 %v1333
  %v1349 = vpop.f32.mrf.mxu0
  %v1350 = vadd.f32 %v723, %v1349
  %v1351 = vpop.f32.mrf.mxu0
  %1352 = vdwg.mxu0
  %1353 = vst.msk [vmem:[%s9] sm:$0xff] %vm232, %v1345
  %1354 = vst.msk [vmem:[%s9 + $0x8] sm:$0xff] %vm232, %v1347
  %1355 = vst.msk [vmem:[%s9 + $0x10] sm:$0xff] %vm232, %v1350
  // Predicated region
  $region38: #{gnn_forward.1} parent=0 // pred_check
    _
  $region39: #{gnn_forward.1} parent=0 // pred_check_branch
    %1357 = sbr.rel (0) target = $region41
  $region40: #{gnn_forward.1} parent=0 // pred_region
    _
  $region41: #{gnn_forward.1} parent=0 // pred_fallthru
    _
  // Predicated region
  $region42: #{gnn_forward.1} parent=0 // pred_check
    _
  $region43: #{gnn_forward.1} parent=0 // pred_check_branch
    %1359 = sbr.rel (0) target = $region45
  $region44: #{gnn_forward.1} parent=0 // pred_region
    _
  $region45: #{gnn_forward.1} parent=0 // pred_fallthru
    _

</llo_original>
